<compile_context>
chip_gen: v5e
topology: v5e:2x2
jax: 0.10.0
libtpu: 0.0.40
codegen_flags: <defaults>
</compile_context>

<pallas_src>
import jax
import jax.numpy as jnp
from jax.experimental import pallas as pl
from jax.experimental.pallas import tpu as pltpu


# -----------------------------------------------------------------------------
# Fused kernel: 3x3 conv (pad=1) + ELU + 2x2 stride-2 transposed conv + ELU.
# One (pre-padded) image per grid step; everything between the two HBM touches
# stays in VMEM.
# -----------------------------------------------------------------------------
def bridge_kernel(x_ref, wconv_ref, wup_ref, o_ref, cols_ref):
    # x_ref    : (1, H+2, W+2, Cin)   bf16  (zero-padded NHWC input)
    # wconv_ref: (3, 3*Cin, Cout)     bf16  (w[dy, dx*Cin + c, o])
    # wup_ref  : (Cout, 4*Cout)       bf16  (w[c, (ky*2+kx)*Cout + o])
    # o_ref    : (1, H*W, 4*Cout)     bf16  (tap-major output)
    # cols_ref : (H+2, W, 3*Cin)      bf16  (im2col over dx only)
    _, Hp2, Wp2, Cin = x_ref.shape
    H, W = Hp2 - 2, Wp2 - 2
    Cout = wconv_ref.shape[-1]

    # ---- 3x im2col over dx, built directly in VMEM (bf16) -------------------
    # Every element of cols_ref is rewritten each step (the zero halo lives in
    # the pre-padded input), so no zero-init pass is needed and every store is
    # a full-width, sublane-aligned row copy.
    x = x_ref[0]                                           # (H+2, W+2, Cin)
    for dx in range(3):
        cols_ref[:, :, dx * Cin:(dx + 1) * Cin] = x[:, dx:dx + W, :]

    # ---- 3x3 conv as 3 accumulating MXU matmuls over dy (K = 3*Cin) ---------
    acc = jnp.zeros((H * W, Cout), jnp.float32)
    for dy in range(3):
        acc = acc + jnp.dot(
            cols_ref[dy:dy + H, :, :].reshape(H * W, 3 * Cin),
            wconv_ref[dy],
            preferred_element_type=jnp.float32)

    # ELU (alpha=1) in f32.  (exp(x)-1 matches the reference; expm1 would be
    # marginally more accurate near 0 but exp is the verified-lowering path.)
    h = jnp.where(acc > 0.0, acc, jnp.exp(acc) - 1.0)

    # ---- 2x2 stride-2 transposed conv: ONE matmul with N = 4*Cout + ELU -----
    t = jnp.dot(h.astype(jnp.bfloat16), wup_ref[...],
                preferred_element_type=jnp.float32)
    o_ref[0] = jnp.where(t > 0.0, t, jnp.exp(t) - 1.0).astype(o_ref.dtype)


# -----------------------------------------------------------------------------
# VMEM budget for one grid step (double-buffered in/out blocks + scratch +
# weights + matmul temps), with 2x headroom.
# -----------------------------------------------------------------------------
def _vmem_limit_bytes(H, W, Cin, Cout):
    bf16, f32 = 2, 4
    x_blk = 2 * (H + 2) * (W + 2) * Cin * bf16            # double-buffered in
    out_blk = 2 * (H * W) * (4 * Cout) * bf16             # double-buffered out
    cols = (H + 2) * W * (3 * Cin) * bf16                 # im2col scratch
    wts = 2 * (3 * (3 * Cin) * Cout + Cout * 4 * Cout) * bf16
    temps = (H * W) * Cout * (f32 + bf16)                 # acc + h (bf16)
    temps += (H * W) * (4 * Cout) * f32                   # upconv f32 temp
    temps += (H * W) * (3 * Cin) * bf16                   # per-dy slice copy
    need = 2 * (x_blk + out_blk + cols + wts + temps)
    # TODO(synk): if `need` approaches 64 MiB (v7x physical VMEM) switch to a
    # halo-tiled spatial grid axis instead of one image per step.
    return int(min(max(need, 16 << 20), 96 << 20))


# -----------------------------------------------------------------------------
# pallas_call wrapper (padded-NHWC bf16 in, tap-major bf16 out)
# -----------------------------------------------------------------------------
def _bridge_pallas(x_pad, wconv_folded, wup_folded):
    N, Hp2, Wp2, Cin = x_pad.shape
    H, W = Hp2 - 2, Wp2 - 2
    Cout = wconv_folded.shape[-1]
    return pl.pallas_call(
        bridge_kernel,
        out_shape=jax.ShapeDtypeStruct((N, H * W, 4 * Cout), jnp.bfloat16),
        grid_spec=pltpu.PrefetchScalarGridSpec(
            num_scalar_prefetch=0,
            grid=(N,),
            in_specs=[
                pl.BlockSpec((1, Hp2, Wp2, Cin), lambda n: (n, 0, 0, 0)),
                pl.BlockSpec((3, 3 * Cin, Cout), lambda n: (0, 0, 0)),
                pl.BlockSpec((Cout, 4 * Cout), lambda n: (0, 0)),
            ],
            out_specs=pl.BlockSpec((1, H * W, 4 * Cout), lambda n: (n, 0, 0)),
            scratch_shapes=[pltpu.VMEM((Hp2, W, 3 * Cin), jnp.bfloat16)],
        ),
        compiler_params=pltpu.CompilerParams(
            dimension_semantics=("parallel",),
            vmem_limit_bytes=_vmem_limit_bytes(H, W, Cin, Cout)),
    )(x_pad, wconv_folded, wup_folded)


@jax.jit
def bridge_forward(x_nchw, w_conv_oihw, w_up_iohw):
    """Bridge forward.  x_nchw: (N, Cin, H, W)  ->  (N, Cout, 2H, 2W) f32."""
    N, Cin, H, W = x_nchw.shape
    Cout = w_conv_oihw.shape[0]

    # NCHW -> NHWC, cast bf16, zero-pad the conv halo once on the (small)
    # input.  This removes the in-kernel zero pass and makes every im2col tap
    # store a full-row, sublane-aligned copy.
    x = jnp.transpose(x_nchw, (0, 2, 3, 1)).astype(jnp.bfloat16)
    x = jnp.pad(x, ((0, 0), (1, 1), (1, 1), (0, 0)))

    # Conv2d weight (Cout, Cin, 3, 3) -> (dy, dx, c, o) -> (3, 3*Cin, Cout).
    w_conv = (jnp.transpose(w_conv_oihw, (2, 3, 1, 0))
              .reshape(3, 3 * Cin, Cout).astype(jnp.bfloat16))
    # ConvTranspose2d weight (C, Cout, 2, 2) -> (c, ky, kx, o) -> (C, 4*Cout).
    w_up = (jnp.transpose(w_up_iohw, (0, 2, 3, 1))
            .reshape(Cout, 4 * Cout).astype(jnp.bfloat16))

    out = _bridge_pallas(x, w_conv, w_up)                  # (N, H*W, 4*Cout) bf16
    out = out.reshape(N, H, W, 2, 2, Cout)
    # (n, h, w, ky, kx, o) -> (n, o, h, ky, w, kx) -> (N, Cout, 2H, 2W):
    # the upconv interleave folds into the layout change; the f32 cast fuses
    # into the same transpose pass.
    y = jnp.transpose(out, (0, 5, 1, 3, 2, 4)).reshape(N, Cout, 2 * H, 2 * W)
    return y.astype(jnp.float32)


# -----------------------------------------------------------------------------
# Pure-JAX reference mirroring the kernel's bf16-input / f32-accum / bf16-out
# math.
# -----------------------------------------------------------------------------
def bridge_reference(x_nchw, w_conv_oihw, w_up_iohw):
    f32 = jnp.float32
    rnd = lambda a: a.astype(jnp.bfloat16).astype(f32)   # bf16 rounding as in kernel
    x, wc, wu = rnd(x_nchw), rnd(w_conv_oihw), rnd(w_up_iohw)

    h = jax.lax.conv_general_dilated(
        x, wc, window_strides=(1, 1), padding="SAME",
        dimension_numbers=("NCHW", "OIHW", "NCHW"),
        precision=jax.lax.Precision.HIGHEST)
    h = jnp.where(h > 0, h, jnp.exp(h) - 1.0)
    h = rnd(h)                                            # kernel casts h to bf16

    N, C, H, W = h.shape
    Cout = w_up_iohw.shape[1]
    y = jnp.zeros((N, Cout, 2 * H, 2 * W), f32)
    for ky in range(2):
        for kx in range(2):
            tap = jnp.einsum("nchw,co->nohw", h, wu[:, :, ky, kx],
                             precision=jax.lax.Precision.HIGHEST)
            y = y.at[:, :, ky::2, kx::2].set(tap)
    y = jnp.where(y > 0, y, jnp.exp(y) - 1.0)
    return rnd(y)                                         # kernel writes bf16 output


if __name__ == "__main__":
    N, Cin, Cout, H, W = 2, 4, 8, 16, 16

    key = jax.random.PRNGKey(0)
    kx_, kw1, kw2 = jax.random.split(key, 3)
    x = jax.random.normal(kx_, (N, Cin, H, W), dtype=jnp.float32)
    # Conv2d weight (Cout, Cin, 3, 3); ConvTranspose2d weight (Cout, Cout, 2, 2)
    w_conv = jax.random.normal(kw1, (Cout, Cin, 3, 3), jnp.float32) * (1.0 / (Cin * 9) ** 0.5)
    w_up = jax.random.normal(kw2, (Cout, Cout, 2, 2), jnp.float32) * (1.0 / (Cout * 4) ** 0.5)

    out = bridge_forward(x, w_conv, w_up)
    out = jax.block_until_ready(out)

    ref = bridge_reference(x, w_conv, w_up)
    assert out.shape == (N, Cout, 2 * H, 2 * W), out.shape
    # Tolerance covers bf16 rounding of the intermediate activation and the
    # bf16 output writeback (one bf16 ulp ~ 4e-3..8e-3 on O(1) values); real
    # indexing/weight-fold bugs would show up as O(0.1..1) errors.
    max_err = float(jnp.max(jnp.abs(out - ref)))
    assert jnp.allclose(out, ref, rtol=1e-2, atol=1e-2), max_err

    print("KERNEL_OK")
</pallas_src>

<mosaic_0001>
module attributes {stable_mosaic.version = 11 : i64} {
  func.func @bridge_kernel(%arg0: i32, %arg1: memref<1x18x18x4xbf16, #tpu.memory_space<vmem>>, %arg2: memref<3x12x8xbf16, #tpu.memory_space<vmem>>, %arg3: memref<8x32xbf16, #tpu.memory_space<vmem>>, %arg4: memref<1x256x32xbf16, #tpu.memory_space<vmem>>, %arg5: memref<18x16x12xbf16, #tpu.memory_space<vmem>>) attributes {dimension_semantics = [#tpu.dimension_semantics<parallel>], iteration_bounds = array<i64: 2>, scalar_prefetch = 0 : i64, scratch_operands = 1 : i64, tpu.core_type = #tpu.core_type<tc>, window_params = [{transform_indices = @transform_0, window_bounds = array<i64: 1, 18, 18, 4>}, {pipeline_mode = #tpu.pipeline_mode<synchronous>, transform_indices = @transform_1, window_bounds = array<i64: 3, 12, 8>}, {pipeline_mode = #tpu.pipeline_mode<synchronous>, transform_indices = @transform_2, window_bounds = array<i64: 8, 32>}, {transform_indices = @transform_3, window_bounds = array<i64: 1, 256, 32>}]} {
    %c0 = arith.constant 0 : index
    %c0_0 = arith.constant 0 : index
    %c0_1 = arith.constant 0 : index
    %c0_2 = arith.constant 0 : index
    %0 = vector.load %arg1[%c0, %c0_0, %c0_1, %c0_2] : memref<1x18x18x4xbf16, #tpu.memory_space<vmem>>, vector<1x18x18x4xbf16>
    %1 = vector.shape_cast %0 : vector<1x18x18x4xbf16> to vector<18x18x4xbf16>
    %2 = vector.extract_strided_slice %1 {offsets = [0, 0, 0], sizes = [18, 16, 4], strides = [1, 1, 1]} : vector<18x18x4xbf16> to vector<18x16x4xbf16>
    %c0_3 = arith.constant 0 : index
    %c0_4 = arith.constant 0 : index
    %c0_5 = arith.constant 0 : index
    %3 = vector.load %arg5[%c0_3, %c0_4, %c0_5] : memref<18x16x12xbf16, #tpu.memory_space<vmem>>, vector<18x16x4xbf16>
    tpu.vector_store %arg5[%c0_3, %c0_4, %c0_5], %2 {strides = array<i32>} : memref<18x16x12xbf16, #tpu.memory_space<vmem>>, vector<18x16x4xbf16>,
    %4 = vector.extract_strided_slice %1 {offsets = [0, 1, 0], sizes = [18, 16, 4], strides = [1, 1, 1]} : vector<18x18x4xbf16> to vector<18x16x4xbf16>
    %c0_6 = arith.constant 0 : index
    %c0_7 = arith.constant 0 : index
    %c4 = arith.constant 4 : index
    %5 = vector.load %arg5[%c0_6, %c0_7, %c4] : memref<18x16x12xbf16, #tpu.memory_space<vmem>>, vector<18x16x4xbf16>
    tpu.vector_store %arg5[%c0_6, %c0_7, %c4], %4 {strides = array<i32>} : memref<18x16x12xbf16, #tpu.memory_space<vmem>>, vector<18x16x4xbf16>,
    %6 = vector.extract_strided_slice %1 {offsets = [0, 2, 0], sizes = [18, 16, 4], strides = [1, 1, 1]} : vector<18x18x4xbf16> to vector<18x16x4xbf16>
    %c0_8 = arith.constant 0 : index
    %c0_9 = arith.constant 0 : index
    %c8 = arith.constant 8 : index
    %7 = vector.load %arg5[%c0_8, %c0_9, %c8] : memref<18x16x12xbf16, #tpu.memory_space<vmem>>, vector<18x16x4xbf16>
    tpu.vector_store %arg5[%c0_8, %c0_9, %c8], %6 {strides = array<i32>} : memref<18x16x12xbf16, #tpu.memory_space<vmem>>, vector<18x16x4xbf16>,
    %cst = arith.constant 0.000000e+00 : f32
    %8 = vector.broadcast %cst : f32 to vector<256x8xf32>
    %c0_10 = arith.constant 0 : index
    %c0_11 = arith.constant 0 : index
    %c0_12 = arith.constant 0 : index
    %9 = vector.load %arg5[%c0_10, %c0_11, %c0_12] : memref<18x16x12xbf16, #tpu.memory_space<vmem>>, vector<16x16x12xbf16>
    %10 = vector.shape_cast %9 : vector<16x16x12xbf16> to vector<256x12xbf16>
    %c0_13 = arith.constant 0 : index
    %c0_14 = arith.constant 0 : index
    %c0_15 = arith.constant 0 : index
    %11 = vector.load %arg2[%c0_13, %c0_14, %c0_15] : memref<3x12x8xbf16, #tpu.memory_space<vmem>>, vector<1x12x8xbf16>
    %12 = vector.shape_cast %11 : vector<1x12x8xbf16> to vector<12x8xbf16>
    %cst_16 = arith.constant dense<0.000000e+00> : vector<256x8xf32>
    %13 = tpu.matmul %10, %12, %cst_16 {dimension_numbers = #tpu.dot_dimension_numbers<[1], [0], [0], [1], [0, 0, 1, 1], [], []>} : vector<256x12xbf16>, vector<12x8xbf16>, vector<256x8xf32> -> vector<256x8xf32>
    %14 = arith.addf %8, %13 : vector<256x8xf32>
    %c1 = arith.constant 1 : index
    %c0_17 = arith.constant 0 : index
    %c0_18 = arith.constant 0 : index
    %15 = vector.load %arg5[%c1, %c0_17, %c0_18] : memref<18x16x12xbf16, #tpu.memory_space<vmem>>, vector<16x16x12xbf16>
    %16 = vector.shape_cast %15 : vector<16x16x12xbf16> to vector<256x12xbf16>
    %c1_19 = arith.constant 1 : index
    %c0_20 = arith.constant 0 : index
    %c0_21 = arith.constant 0 : index
    %17 = vector.load %arg2[%c1_19, %c0_20, %c0_21] : memref<3x12x8xbf16, #tpu.memory_space<vmem>>, vector<1x12x8xbf16>
    %18 = vector.shape_cast %17 : vector<1x12x8xbf16> to vector<12x8xbf16>
    %cst_22 = arith.constant dense<0.000000e+00> : vector<256x8xf32>
    %19 = tpu.matmul %16, %18, %cst_22 {dimension_numbers = #tpu.dot_dimension_numbers<[1], [0], [0], [1], [0, 0, 1, 1], [], []>} : vector<256x12xbf16>, vector<12x8xbf16>, vector<256x8xf32> -> vector<256x8xf32>
    %20 = arith.addf %14, %19 : vector<256x8xf32>
    %c2 = arith.constant 2 : index
    %c0_23 = arith.constant 0 : index
    %c0_24 = arith.constant 0 : index
    %21 = vector.load %arg5[%c2, %c0_23, %c0_24] : memref<18x16x12xbf16, #tpu.memory_space<vmem>>, vector<16x16x12xbf16>
    %22 = vector.shape_cast %21 : vector<16x16x12xbf16> to vector<256x12xbf16>
    %c2_25 = arith.constant 2 : index
    %c0_26 = arith.constant 0 : index
    %c0_27 = arith.constant 0 : index
    %23 = vector.load %arg2[%c2_25, %c0_26, %c0_27] : memref<3x12x8xbf16, #tpu.memory_space<vmem>>, vector<1x12x8xbf16>
    %24 = vector.shape_cast %23 : vector<1x12x8xbf16> to vector<12x8xbf16>
    %cst_28 = arith.constant dense<0.000000e+00> : vector<256x8xf32>
    %25 = tpu.matmul %22, %24, %cst_28 {dimension_numbers = #tpu.dot_dimension_numbers<[1], [0], [0], [1], [0, 0, 1, 1], [], []>} : vector<256x12xbf16>, vector<12x8xbf16>, vector<256x8xf32> -> vector<256x8xf32>
    %26 = arith.addf %20, %25 : vector<256x8xf32>
    %cst_29 = arith.constant 0.000000e+00 : f32
    %27 = vector.broadcast %cst_29 : f32 to vector<256x8xf32>
    %28 = arith.cmpf ogt, %26, %27 : vector<256x8xf32>
    %29 = math.exp %26 : vector<256x8xf32>
    %cst_30 = arith.constant 1.000000e+00 : f32
    %30 = vector.broadcast %cst_30 : f32 to vector<256x8xf32>
    %31 = arith.subf %29, %30 : vector<256x8xf32>
    %32 = arith.select %28, %26, %31 : vector<256x8xi1>, vector<256x8xf32>
    %33 = arith.truncf %32 : vector<256x8xf32> to vector<256x8xbf16>
    %c0_31 = arith.constant 0 : index
    %c0_32 = arith.constant 0 : index
    %34 = vector.load %arg3[%c0_31, %c0_32] : memref<8x32xbf16, #tpu.memory_space<vmem>>, vector<8x32xbf16>
    %cst_33 = arith.constant dense<0.000000e+00> : vector<256x32xf32>
    %35 = tpu.matmul %33, %34, %cst_33 {dimension_numbers = #tpu.dot_dimension_numbers<[1], [0], [0], [1], [0, 0, 1, 1], [], []>} : vector<256x8xbf16>, vector<8x32xbf16>, vector<256x32xf32> -> vector<256x32xf32>
    %cst_34 = arith.constant 0.000000e+00 : f32
    %36 = vector.broadcast %cst_34 : f32 to vector<256x32xf32>
    %37 = arith.cmpf ogt, %35, %36 : vector<256x32xf32>
    %38 = math.exp %35 : vector<256x32xf32>
    %cst_35 = arith.constant 1.000000e+00 : f32
    %39 = vector.broadcast %cst_35 : f32 to vector<256x32xf32>
    %40 = arith.subf %38, %39 : vector<256x32xf32>
    %41 = arith.select %37, %35, %40 : vector<256x32xi1>, vector<256x32xf32>
    %42 = arith.truncf %41 : vector<256x32xf32> to vector<256x32xbf16>
    %c0_36 = arith.constant 0 : index
    %c0_37 = arith.constant 0 : index
    %c0_38 = arith.constant 0 : index
    %43 = vector.load %arg4[%c0_36, %c0_37, %c0_38] : memref<1x256x32xbf16, #tpu.memory_space<vmem>>, vector<1x256x32xbf16>
    %44 = vector.shape_cast %43 : vector<1x256x32xbf16> to vector<256x32xbf16>
    %45 = vector.shape_cast %42 : vector<256x32xbf16> to vector<1x256x32xbf16>
    tpu.vector_store %arg4[%c0_36, %c0_37, %c0_38], %45 {strides = array<i32>} : memref<1x256x32xbf16, #tpu.memory_space<vmem>>, vector<1x256x32xbf16>,
    return
  }
  func.func @transform_0(%arg0: i32) -> (i32, i32, i32, i32) {
    %c0_i32 = arith.constant 0 : i32
    %c0_i32_0 = arith.constant 0 : i32
    %c0_i32_1 = arith.constant 0 : i32
    %c0_i32_2 = arith.constant 0 : i32
    return %arg0, %c0_i32, %c0_i32_0, %c0_i32_1 : i32, i32, i32, i32
  }
  func.func @transform_1(%arg0: i32) -> (i32, i32, i32) {
    %c0_i32 = arith.constant 0 : i32
    %c0_i32_0 = arith.constant 0 : i32
    %c0_i32_1 = arith.constant 0 : i32
    %c0_i32_2 = arith.constant 0 : i32
    return %c0_i32, %c0_i32_0, %c0_i32_1 : i32, i32, i32
  }
  func.func @transform_2(%arg0: i32) -> (i32, i32) {
    %c0_i32 = arith.constant 0 : i32
    %c0_i32_0 = arith.constant 0 : i32
    %c0_i32_1 = arith.constant 0 : i32
    return %c0_i32, %c0_i32_0 : i32, i32
  }
  func.func @transform_3(%arg0: i32) -> (i32, i32, i32) {
    %c0_i32 = arith.constant 0 : i32
    %c0_i32_0 = arith.constant 0 : i32
    %c0_i32_1 = arith.constant 0 : i32
    return %arg0, %c0_i32, %c0_i32_0 : i32, i32, i32
  }
}

</mosaic_0001>

<llo_original>
// kernel: bridge_forward.1
$region0: #{bridge_forward.1}
  #allocation0 [shape = 'u32[]', space=smem, size = 0x4, offset = 0x4, fixed_abs, tag = 'smem constant byte address 0x4 - core index']
  #allocation1 [shape = 'u32[72,128]{1,0:T(1,128)}', space=vmem, size = 0x9000, scoped, tag = 'internal scratch']
  #allocation2 [shape = 'bf16[18,16,12]{2,1,0:T(8,128)(2,1)}', space=vmem, size = 0x12000, scoped, tag = 'scratch operand']
  %s0 = inlined_call_operand.vmem [shape: bf16[2,18,18,4], index: 0, kind: input, shape index: {}]
  %s1 = inlined_call_operand.vmem [shape: bf16[3,12,8], index: 1, kind: input, shape index: {}]
  %s2 = inlined_call_operand.vmem [shape: bf16[8,32], index: 2, kind: input, shape index: {}]
  %s3 = inlined_call_operand.vmem [shape: bf16[2,256,32], index: 3, kind: output, shape index: {}]
  %s4 = sld [smem:[#allocation0]]
  $region45: #{bridge_forward.1} parent=0
    _
  %s6 = ssub.s32 1, %s4
  %s7 = scalar_select 0, %s6, %s4
  loop: start=0, step=1, limit=4
  $region2: #{bridge_forward.1} parent=0 // loop_pre_header
    _
  $region3: #{bridge_forward.1} parent=0 // loop_header
    %s9 = sphi 0, %s13
    %p10 = scmp.ge.s32.totalorder %s9, 4
    %s19 = sphi 0, %s21
    %s22 = sphi 0, %s19
    %s23 = sphi 0, %s22
    %s39 = sphi 0, %s23
    %s43 = sphi 0, %s43
    %s45 = sphi 0, %s43
    %s46 = sphi 0, %s45
    %s60 = sphi 0, %s46
    %s64 = sphi 0, %s64
    %s66 = sphi 0, %s64
    %s67 = sphi 0, %s66
    %s81 = sphi 0, %s67
    %s87 = sphi 0, %s89
    %s90 = sphi 0, %s87
    %s91 = sphi 0, %s90
    %s107 = sphi 0, %s91
  $region4: #{bridge_forward.1} parent=0 // loop_header_branch
    %12 = sbr.rel (%p10) target = $region8
  $region5: #{bridge_forward.1} parent=0 // loop_body
    %s14 = ssub.s32 %s9, 1
    %s15 = ssub.s32 %s9, 2
    %s16 = sadd.s32 %s9, 1
    %s17 = ssub.s32 %s9, %s16
    %p18 = scmp.eq.s32.totalorder %s17, 0
    %s20 = sadd.s32 %s19, 1
    %s21 = scalar_select %p18, %s19, %s20
    %p24 = pneg %p18
    %p25 = scmp.eq.s32.totalorder %s9, 1
    %p26 = por %p24, %p25
    %p27 = scmp.ne.s32.totalorder %s19, %s22
    %p28 = scmp.eq.s32.totalorder %s9, 0
    %p29 = por %p27, %p28
    %p30 = scmp.ne.s32.totalorder %s19, %s22
    %p31 = scmp.eq.s32.totalorder %s14, 1
    %p32 = por %p30, %p31
    %p33 = scmp.ne.s32.totalorder %s22, %s23
    %p34 = scmp.eq.s32.totalorder %s14, 0
    %p35 = por %p33, %p34
    %p36 = scmp.ne.s32.totalorder %s22, %s23
    %p37 = scmp.eq.s32.totalorder %s15, 1
    %p38 = por %p36, %p37
    %p40 = scmp.ne.s32.totalorder %s23, %s39
    %p41 = scmp.eq.s32.totalorder %s15, 0
    %p42 = por %p40, %p41
    %s44 = sadd.s32 %s43, 1
    %p47 = scmp.eq.s32.totalorder %s9, 1
    %p48 = scmp.ne.s32.totalorder %s43, %s45
    %p49 = scmp.eq.s32.totalorder %s9, 0
    %p50 = por %p48, %p49
    %p51 = scmp.ne.s32.totalorder %s43, %s45
    %p52 = scmp.eq.s32.totalorder %s14, 1
    %p53 = por %p51, %p52
    %p54 = scmp.ne.s32.totalorder %s45, %s46
    %p55 = scmp.eq.s32.totalorder %s14, 0
    %p56 = por %p54, %p55
    %p57 = scmp.ne.s32.totalorder %s45, %s46
    %p58 = scmp.eq.s32.totalorder %s15, 1
    %p59 = por %p57, %p58
    %p61 = scmp.ne.s32.totalorder %s46, %s60
    %p62 = scmp.eq.s32.totalorder %s15, 0
    %p63 = por %p61, %p62
    %s65 = sadd.s32 %s64, 1
    %p68 = scmp.eq.s32.totalorder %s9, 1
    %p69 = scmp.ne.s32.totalorder %s64, %s66
    %p70 = scmp.eq.s32.totalorder %s9, 0
    %p71 = por %p69, %p70
    %p72 = scmp.ne.s32.totalorder %s64, %s66
    %p73 = scmp.eq.s32.totalorder %s14, 1
    %p74 = por %p72, %p73
    %p75 = scmp.ne.s32.totalorder %s66, %s67
    %p76 = scmp.eq.s32.totalorder %s14, 0
    %p77 = por %p75, %p76
    %p78 = scmp.ne.s32.totalorder %s66, %s67
    %p79 = scmp.eq.s32.totalorder %s15, 1
    %p80 = por %p78, %p79
    %p82 = scmp.ne.s32.totalorder %s67, %s81
    %p83 = scmp.eq.s32.totalorder %s15, 0
    %p84 = por %p82, %p83
    %s85 = ssub.s32 %s9, %s16
    %p86 = scmp.eq.s32.totalorder %s85, 0
    %s88 = sadd.s32 %s87, 1
    %s89 = scalar_select %p86, %s87, %s88
    %p92 = pneg %p86
    %p93 = scmp.eq.s32.totalorder %s9, 1
    %p94 = por %p92, %p93
    %p95 = scmp.ne.s32.totalorder %s87, %s90
    %p96 = scmp.eq.s32.totalorder %s9, 0
    %p97 = por %p95, %p96
    %p98 = scmp.ne.s32.totalorder %s87, %s90
    %p99 = scmp.eq.s32.totalorder %s14, 1
    %p100 = por %p98, %p99
    %p101 = scmp.ne.s32.totalorder %s90, %s91
    %p102 = scmp.eq.s32.totalorder %s14, 0
    %p103 = por %p101, %p102
    %p104 = scmp.ne.s32.totalorder %s90, %s91
    %p105 = scmp.eq.s32.totalorder %s15, 1
    %p106 = por %p104, %p105
    %p108 = scmp.ne.s32.totalorder %s91, %s107
    %p109 = scmp.eq.s32.totalorder %s15, 0
    %p110 = por %p108, %p109
    %p111 = scmp.le.s32.totalorder 1, %s9
    %p112 = scmp.lt.s32.totalorder %s9, 3
    %p113 = pnand %p111, %p112
    %p114 = pneg %p113
    // Predicated region
    $region9: #{bridge_forward.1} parent=5 // pred_check
      _
    $region10: #{bridge_forward.1} parent=5 // pred_check_branch
      %116 = sbr.rel (%p113) target = $region12
    $region11: #{bridge_forward.1} parent=5 // pred_region
      %s117 = ssub.s32 %s9, 1
      // Predicated region
      $region13: #{bridge_forward.1} parent=11 // pred_check
        %p118 = pneg %p56
      $region14: #{bridge_forward.1} parent=11 // pred_check_branch
        %120 = sbr.rel (%p118) target = $region16
      $region15: #{bridge_forward.1} parent=11 // pred_region
        _
      $region16: #{bridge_forward.1} parent=11 // pred_fallthru
        _
      // Predicated region
      $region17: #{bridge_forward.1} parent=11 // pred_check
        %p121 = pneg %p77
      $region18: #{bridge_forward.1} parent=11 // pred_check_branch
        %123 = sbr.rel (%p121) target = $region20
      $region19: #{bridge_forward.1} parent=11 // pred_region
        _
      $region20: #{bridge_forward.1} parent=11 // pred_fallthru
        _
    $region12: #{bridge_forward.1} parent=5 // pred_fallthru
      _
    %p124 = scmp.lt.s32.totalorder %s9, 2
    // Predicated region
    $region21: #{bridge_forward.1} parent=5 // pred_check
      %p125 = pneg %p124
    $region22: #{bridge_forward.1} parent=5 // pred_check_branch
      %127 = sbr.rel (%p125) target = $region24
    $region23: #{bridge_forward.1} parent=5 // pred_region
      // Predicated region
      $region25: #{bridge_forward.1} parent=23 // pred_check
        %p128 = pneg %p29
      $region26: #{bridge_forward.1} parent=23 // pred_check_branch
        %130 = sbr.rel (%p128) target = $region28
      $region27: #{bridge_forward.1} parent=23 // pred_region
        %p131 = scmp.lt.s32.totalorder %s9, 1
        %s132 = scalar_select %p131, %s9, 1
        %s133 = smul.addr %s132, 54
        %s134 = smul.addr %s133, 4
        %s135 = scalar_lea.vmem %s0, %s134
      $region28: #{bridge_forward.1} parent=23 // pred_fallthru
        _
    $region24: #{bridge_forward.1} parent=5 // pred_fallthru
      _
    %p136 = scmp.le.s32.totalorder 1, %s9
    %p137 = scmp.lt.s32.totalorder %s9, 3
    %p138 = pnand %p136, %p137
    %p139 = pneg %p138
    // Predicated region
    $region29: #{bridge_forward.1} parent=5 // pred_check
      _
    $region30: #{bridge_forward.1} parent=5 // pred_check_branch
      %141 = sbr.rel (%p138) target = $region32
    $region31: #{bridge_forward.1} parent=5 // pred_region
      %s142 = ssub.s32 %s9, 1
      %p143 = scmp.lt.s32.totalorder %s14, 1
      %s144 = scalar_select %p143, %s14, 1
      %s145 = smul.addr %s144, 54
      %s146 = smul.addr %s145, 4
      %s147 = scalar_lea.vmem %s0, %s146
      %p148 = pneg %p35
      %p149 = pneg %p32
      %p150 = pneg %p56
      %p151 = pneg %p53
      %p152 = pneg %p77
      %p153 = pneg %p74
      %p154 = pneg %p103
      %p155 = pneg %p100
      %p156 = scmp.lt.s32.totalorder %s14, 1
      %s157 = scalar_select %p156, %s14, 1
      %s158 = smul.addr %s157, 32
      %s159 = smul.addr %s158, 4
      %s160 = scalar_lea.vmem %s3, %s159
      %p161 = scmp.lt.s32.totalorder %s14, 1
      %s162 = scalar_select %p161, %s14, 1
      %s163 = smul.addr %s162, 54
      %s164 = smul.addr %s163, 4
      %s165 = scalar_lea.vmem %s0, %s164
      %p166 = scmp.lt.s32.totalorder %s14, 1
      %s167 = scalar_select %p166, %s14, 1
      %s168 = smul.addr %s167, 32
      %s169 = smul.addr %s168, 4
      %s170 = scalar_lea.vmem %s3, %s169
      %v172 = vld [vmem:[%s165] sm:$0xf]
      %v173 = vld [vmem:[%s165 + $0x4] sm:$0xf]
      %v174 = vld [vmem:[%s165 + $0x8] sm:$0x1]
      %v175 = vld [vmem:[%s165 + $0xc] sm:$0xf]
      %v176 = vld [vmem:[%s165 + $0x10] sm:$0xf]
      %v177 = vld [vmem:[%s165 + $0x14] sm:$0x1]
      %v178 = vld [vmem:[%s165 + $0x18] sm:$0xf]
      %v179 = vld [vmem:[%s165 + $0x1c] sm:$0xf]
      %v180 = vld [vmem:[%s165 + $0x20] sm:$0x1]
      %v181 = vld [vmem:[%s165 + $0x24] sm:$0xf]
      %v182 = vld [vmem:[%s165 + $0x28] sm:$0xf]
      %v183 = vld [vmem:[%s165 + $0x2c] sm:$0x1]
      %v184 = vld [vmem:[%s165 + $0x30] sm:$0xf]
      %v185 = vld [vmem:[%s165 + $0x34] sm:$0xf]
      %v186 = vld [vmem:[%s165 + $0x38] sm:$0x1]
      %v187 = vld [vmem:[%s165 + $0x3c] sm:$0xf]
      %v188 = vld [vmem:[%s165 + $0x40] sm:$0xf]
      %v189 = vld [vmem:[%s165 + $0x44] sm:$0x1]
      %v190 = vld [vmem:[%s165 + $0x48] sm:$0xf]
      %v191 = vld [vmem:[%s165 + $0x4c] sm:$0xf]
      %v192 = vld [vmem:[%s165 + $0x50] sm:$0x1]
      %v193 = vld [vmem:[%s165 + $0x54] sm:$0xf]
      %v194 = vld [vmem:[%s165 + $0x58] sm:$0xf]
      %v195 = vld [vmem:[%s165 + $0x5c] sm:$0x1]
      %v196 = vld [vmem:[%s165 + $0x60] sm:$0xf]
      %v197 = vld [vmem:[%s165 + $0x64] sm:$0xf]
      %v198 = vld [vmem:[%s165 + $0x68] sm:$0x1]
      %v199 = vld [vmem:[%s165 + $0x6c] sm:$0xf]
      %v200 = vld [vmem:[%s165 + $0x70] sm:$0xf]
      %v201 = vld [vmem:[%s165 + $0x74] sm:$0x1]
      %v202 = vld [vmem:[%s165 + $0x78] sm:$0xf]
      %v203 = vld [vmem:[%s165 + $0x7c] sm:$0xf]
      %v204 = vld [vmem:[%s165 + $0x80] sm:$0x1]
      %v205 = vld [vmem:[%s165 + $0x84] sm:$0xf]
      %v206 = vld [vmem:[%s165 + $0x88] sm:$0xf]
      %v207 = vld [vmem:[%s165 + $0x8c] sm:$0x1]
      %v208 = vld [vmem:[%s165 + $0x90] sm:$0xf]
      %v209 = vld [vmem:[%s165 + $0x94] sm:$0xf]
      %v210 = vld [vmem:[%s165 + $0x98] sm:$0x1]
      %v211 = vld [vmem:[%s165 + $0x9c] sm:$0xf]
      %v212 = vld [vmem:[%s165 + $0xa0] sm:$0xf]
      %v213 = vld [vmem:[%s165 + $0xa4] sm:$0x1]
      %v214 = vld [vmem:[%s165 + $0xa8] sm:$0xf]
      %v215 = vld [vmem:[%s165 + $0xac] sm:$0xf]
      %v216 = vld [vmem:[%s165 + $0xb0] sm:$0x1]
      %v217 = vld [vmem:[%s165 + $0xb4] sm:$0xf]
      %v218 = vld [vmem:[%s165 + $0xb8] sm:$0xf]
      %v219 = vld [vmem:[%s165 + $0xbc] sm:$0x1]
      %v220 = vld [vmem:[%s165 + $0xc0] sm:$0xf]
      %v221 = vld [vmem:[%s165 + $0xc4] sm:$0xf]
      %v222 = vld [vmem:[%s165 + $0xc8] sm:$0x1]
      %v223 = vld [vmem:[%s165 + $0xcc] sm:$0xf]
      %v224 = vld [vmem:[%s165 + $0xd0] sm:$0xf]
      %v225 = vld [vmem:[%s165 + $0xd4] sm:$0x1]
      %vm226 = vcmask 27648
      %227 = vst.msk [vmem:[#allocation2] sm:$0xf] %vm226, %v172
      %228 = vst.msk [vmem:[#allocation2 + $0x4] sm:$0xf] %vm226, %v173
      %229 = vst.msk [vmem:[#allocation2 + $0x8] sm:$0xf] %vm226, %v175
      %230 = vst.msk [vmem:[#allocation2 + $0xc] sm:$0xf] %vm226, %v176
      %231 = vst.msk [vmem:[#allocation2 + $0x10] sm:$0xf] %vm226, %v178
      %232 = vst.msk [vmem:[#allocation2 + $0x14] sm:$0xf] %vm226, %v179
      %233 = vst.msk [vmem:[#allocation2 + $0x18] sm:$0xf] %vm226, %v181
      %234 = vst.msk [vmem:[#allocation2 + $0x1c] sm:$0xf] %vm226, %v182
      %235 = vst.msk [vmem:[#allocation2 + $0x20] sm:$0xf] %vm226, %v184
      %236 = vst.msk [vmem:[#allocation2 + $0x24] sm:$0xf] %vm226, %v185
      %237 = vst.msk [vmem:[#allocation2 + $0x28] sm:$0xf] %vm226, %v187
      %238 = vst.msk [vmem:[#allocation2 + $0x2c] sm:$0xf] %vm226, %v188
      %239 = vst.msk [vmem:[#allocation2 + $0x30] sm:$0xf] %vm226, %v190
      %240 = vst.msk [vmem:[#allocation2 + $0x34] sm:$0xf] %vm226, %v191
      %241 = vst.msk [vmem:[#allocation2 + $0x38] sm:$0xf] %vm226, %v193
      %242 = vst.msk [vmem:[#allocation2 + $0x3c] sm:$0xf] %vm226, %v194
      %243 = vst.msk [vmem:[#allocation2 + $0x40] sm:$0xf] %vm226, %v196
      %244 = vst.msk [vmem:[#allocation2 + $0x44] sm:$0xf] %vm226, %v197
      %245 = vst.msk [vmem:[#allocation2 + $0x48] sm:$0xf] %vm226, %v199
      %246 = vst.msk [vmem:[#allocation2 + $0x4c] sm:$0xf] %vm226, %v200
      %247 = vst.msk [vmem:[#allocation2 + $0x50] sm:$0xf] %vm226, %v202
      %248 = vst.msk [vmem:[#allocation2 + $0x54] sm:$0xf] %vm226, %v203
      %249 = vst.msk [vmem:[#allocation2 + $0x58] sm:$0xf] %vm226, %v205
      %250 = vst.msk [vmem:[#allocation2 + $0x5c] sm:$0xf] %vm226, %v206
      %251 = vst.msk [vmem:[#allocation2 + $0x60] sm:$0xf] %vm226, %v208
      %252 = vst.msk [vmem:[#allocation2 + $0x64] sm:$0xf] %vm226, %v209
      %253 = vst.msk [vmem:[#allocation2 + $0x68] sm:$0xf] %vm226, %v211
      %254 = vst.msk [vmem:[#allocation2 + $0x6c] sm:$0xf] %vm226, %v212
      %255 = vst.msk [vmem:[#allocation2 + $0x70] sm:$0xf] %vm226, %v214
      %256 = vst.msk [vmem:[#allocation2 + $0x74] sm:$0xf] %vm226, %v215
      %257 = vst.msk [vmem:[#allocation2 + $0x78] sm:$0xf] %vm226, %v217
      %258 = vst.msk [vmem:[#allocation2 + $0x7c] sm:$0xf] %vm226, %v218
      %259 = vst.msk [vmem:[#allocation2 + $0x80] sm:$0xf] %vm226, %v220
      %260 = vst.msk [vmem:[#allocation2 + $0x84] sm:$0xf] %vm226, %v221
      %261 = vst.msk [vmem:[#allocation2 + $0x88] sm:$0xf] %vm226, %v223
      %262 = vst.msk [vmem:[#allocation2 + $0x8c] sm:$0xf] %vm226, %v224
      %vm263 = vsmask.f32 3328
      %vm264 = vsmask.f32 7440
      %vm265 = vmor %vm263, %vm264
      %v267 = vshrl.u32 %v172, 16
      %v269 = vrot.slane %v267, 4
      %v270 = vshll.u32 %v172, 16
      %v272 = vrot.slane %v270, 5
      %v273 = vor.u32 %v269, %v272
      %v274 = vrot.slane %v273, 4
      %v276 = vshll.u32 %v173, 16
      %v278 = vrot.slane %v276, 5
      %v279 = vsel %vm265, %v274, %v278
      %v280 = vshrl.u32 %v173, 16
      %v282 = vrot.slane %v280, 4
      %v283 = vor.u32 %v282, %v278
      %v284 = vrot.slane %v283, 4
      %v286 = vshll.u32 %v174, 16
      %v288 = vrot.slane %v286, 5
      %v289 = vsel %vm265, %v284, %v288
      %v291 = vshrl.u32 %v175, 16
      %v293 = vrot.slane %v291, 4
      %v294 = vshll.u32 %v175, 16
      %v296 = vrot.slane %v294, 5
      %v297 = vor.u32 %v293, %v296
      %v298 = vrot.slane %v297, 4
      %v300 = vshll.u32 %v176, 16
      %v302 = vrot.slane %v300, 5
      %v303 = vsel %vm265, %v298, %v302
      %v304 = vshrl.u32 %v176, 16
      %v306 = vrot.slane %v304, 4
      %v307 = vor.u32 %v306, %v302
      %v308 = vrot.slane %v307, 4
      %v310 = vshll.u32 %v177, 16
      %v312 = vrot.slane %v310, 5
      %v313 = vsel %vm265, %v308, %v312
      %v315 = vshrl.u32 %v178, 16
      %v317 = vrot.slane %v315, 4
      %v318 = vshll.u32 %v178, 16
      %v320 = vrot.slane %v318, 5
      %v321 = vor.u32 %v317, %v320
      %v322 = vrot.slane %v321, 4
      %v324 = vshll.u32 %v179, 16
      %v326 = vrot.slane %v324, 5
      %v327 = vsel %vm265, %v322, %v326
      %v328 = vshrl.u32 %v179, 16
      %v330 = vrot.slane %v328, 4
      %v331 = vor.u32 %v330, %v326
      %v332 = vrot.slane %v331, 4
      %v334 = vshll.u32 %v180, 16
      %v336 = vrot.slane %v334, 5
      %v337 = vsel %vm265, %v332, %v336
      %v339 = vshrl.u32 %v181, 16
      %v341 = vrot.slane %v339, 4
      %v342 = vshll.u32 %v181, 16
      %v344 = vrot.slane %v342, 5
      %v345 = vor.u32 %v341, %v344
      %v346 = vrot.slane %v345, 4
      %v348 = vshll.u32 %v182, 16
      %v350 = vrot.slane %v348, 5
      %v351 = vsel %vm265, %v346, %v350
      %v352 = vshrl.u32 %v182, 16
      %v354 = vrot.slane %v352, 4
      %v355 = vor.u32 %v354, %v350
      %v356 = vrot.slane %v355, 4
      %v358 = vshll.u32 %v183, 16
      %v360 = vrot.slane %v358, 5
      %v361 = vsel %vm265, %v356, %v360
      %v363 = vshrl.u32 %v184, 16
      %v365 = vrot.slane %v363, 4
      %v366 = vshll.u32 %v184, 16
      %v368 = vrot.slane %v366, 5
      %v369 = vor.u32 %v365, %v368
      %v370 = vrot.slane %v369, 4
      %v372 = vshll.u32 %v185, 16
      %v374 = vrot.slane %v372, 5
      %v375 = vsel %vm265, %v370, %v374
      %v376 = vshrl.u32 %v185, 16
      %v378 = vrot.slane %v376, 4
      %v379 = vor.u32 %v378, %v374
      %v380 = vrot.slane %v379, 4
      %v382 = vshll.u32 %v186, 16
      %v384 = vrot.slane %v382, 5
      %v385 = vsel %vm265, %v380, %v384
      %v387 = vshrl.u32 %v187, 16
      %v389 = vrot.slane %v387, 4
      %v390 = vshll.u32 %v187, 16
      %v392 = vrot.slane %v390, 5
      %v393 = vor.u32 %v389, %v392
      %v394 = vrot.slane %v393, 4
      %v396 = vshll.u32 %v188, 16
      %v398 = vrot.slane %v396, 5
      %v399 = vsel %vm265, %v394, %v398
      %v400 = vshrl.u32 %v188, 16
      %v402 = vrot.slane %v400, 4
      %v403 = vor.u32 %v402, %v398
      %v404 = vrot.slane %v403, 4
      %v406 = vshll.u32 %v189, 16
      %v408 = vrot.slane %v406, 5
      %v409 = vsel %vm265, %v404, %v408
      %v411 = vshrl.u32 %v190, 16
      %v413 = vrot.slane %v411, 4
      %v414 = vshll.u32 %v190, 16
      %v416 = vrot.slane %v414, 5
      %v417 = vor.u32 %v413, %v416
      %v418 = vrot.slane %v417, 4
      %v420 = vshll.u32 %v191, 16
      %v422 = vrot.slane %v420, 5
      %v423 = vsel %vm265, %v418, %v422
      %v424 = vshrl.u32 %v191, 16
      %v426 = vrot.slane %v424, 4
      %v427 = vor.u32 %v426, %v422
      %v428 = vrot.slane %v427, 4
      %v430 = vshll.u32 %v192, 16
      %v432 = vrot.slane %v430, 5
      %v433 = vsel %vm265, %v428, %v432
      %v435 = vshrl.u32 %v193, 16
      %v437 = vrot.slane %v435, 4
      %v438 = vshll.u32 %v193, 16
      %v440 = vrot.slane %v438, 5
      %v441 = vor.u32 %v437, %v440
      %v442 = vrot.slane %v441, 4
      %v444 = vshll.u32 %v194, 16
      %v446 = vrot.slane %v444, 5
      %v447 = vsel %vm265, %v442, %v446
      %v448 = vshrl.u32 %v194, 16
      %v450 = vrot.slane %v448, 4
      %v451 = vor.u32 %v450, %v446
      %v452 = vrot.slane %v451, 4
      %v454 = vshll.u32 %v195, 16
      %v456 = vrot.slane %v454, 5
      %v457 = vsel %vm265, %v452, %v456
      %v459 = vshrl.u32 %v196, 16
      %v461 = vrot.slane %v459, 4
      %v462 = vshll.u32 %v196, 16
      %v464 = vrot.slane %v462, 5
      %v465 = vor.u32 %v461, %v464
      %v466 = vrot.slane %v465, 4
      %v468 = vshll.u32 %v197, 16
      %v470 = vrot.slane %v468, 5
      %v471 = vsel %vm265, %v466, %v470
      %v472 = vshrl.u32 %v197, 16
      %v474 = vrot.slane %v472, 4
      %v475 = vor.u32 %v474, %v470
      %v476 = vrot.slane %v475, 4
      %v478 = vshll.u32 %v198, 16
      %v480 = vrot.slane %v478, 5
      %v481 = vsel %vm265, %v476, %v480
      %v483 = vshrl.u32 %v199, 16
      %v485 = vrot.slane %v483, 4
      %v486 = vshll.u32 %v199, 16
      %v488 = vrot.slane %v486, 5
      %v489 = vor.u32 %v485, %v488
      %v490 = vrot.slane %v489, 4
      %v492 = vshll.u32 %v200, 16
      %v494 = vrot.slane %v492, 5
      %v495 = vsel %vm265, %v490, %v494
      %v496 = vshrl.u32 %v200, 16
      %v498 = vrot.slane %v496, 4
      %v499 = vor.u32 %v498, %v494
      %v500 = vrot.slane %v499, 4
      %v502 = vshll.u32 %v201, 16
      %v504 = vrot.slane %v502, 5
      %v505 = vsel %vm265, %v500, %v504
      %v507 = vshrl.u32 %v202, 16
      %v509 = vrot.slane %v507, 4
      %v510 = vshll.u32 %v202, 16
      %v512 = vrot.slane %v510, 5
      %v513 = vor.u32 %v509, %v512
      %v514 = vrot.slane %v513, 4
      %v516 = vshll.u32 %v203, 16
      %v518 = vrot.slane %v516, 5
      %v519 = vsel %vm265, %v514, %v518
      %v520 = vshrl.u32 %v203, 16
      %v522 = vrot.slane %v520, 4
      %v523 = vor.u32 %v522, %v518
      %v524 = vrot.slane %v523, 4
      %v526 = vshll.u32 %v204, 16
      %v528 = vrot.slane %v526, 5
      %v529 = vsel %vm265, %v524, %v528
      %v531 = vshrl.u32 %v205, 16
      %v533 = vrot.slane %v531, 4
      %v534 = vshll.u32 %v205, 16
      %v536 = vrot.slane %v534, 5
      %v537 = vor.u32 %v533, %v536
      %v538 = vrot.slane %v537, 4
      %v540 = vshll.u32 %v206, 16
      %v542 = vrot.slane %v540, 5
      %v543 = vsel %vm265, %v538, %v542
      %v544 = vshrl.u32 %v206, 16
      %v546 = vrot.slane %v544, 4
      %v547 = vor.u32 %v546, %v542
      %v548 = vrot.slane %v547, 4
      %v550 = vshll.u32 %v207, 16
      %v552 = vrot.slane %v550, 5
      %v553 = vsel %vm265, %v548, %v552
      %v555 = vshrl.u32 %v208, 16
      %v557 = vrot.slane %v555, 4
      %v558 = vshll.u32 %v208, 16
      %v560 = vrot.slane %v558, 5
      %v561 = vor.u32 %v557, %v560
      %v562 = vrot.slane %v561, 4
      %v564 = vshll.u32 %v209, 16
      %v566 = vrot.slane %v564, 5
      %v567 = vsel %vm265, %v562, %v566
      %v568 = vshrl.u32 %v209, 16
      %v570 = vrot.slane %v568, 4
      %v571 = vor.u32 %v570, %v566
      %v572 = vrot.slane %v571, 4
      %v574 = vshll.u32 %v210, 16
      %v576 = vrot.slane %v574, 5
      %v577 = vsel %vm265, %v572, %v576
      %v579 = vshrl.u32 %v211, 16
      %v581 = vrot.slane %v579, 4
      %v582 = vshll.u32 %v211, 16
      %v584 = vrot.slane %v582, 5
      %v585 = vor.u32 %v581, %v584
      %v586 = vrot.slane %v585, 4
      %v588 = vshll.u32 %v212, 16
      %v590 = vrot.slane %v588, 5
      %v591 = vsel %vm265, %v586, %v590
      %v592 = vshrl.u32 %v212, 16
      %v594 = vrot.slane %v592, 4
      %v595 = vor.u32 %v594, %v590
      %v596 = vrot.slane %v595, 4
      %v598 = vshll.u32 %v213, 16
      %v600 = vrot.slane %v598, 5
      %v601 = vsel %vm265, %v596, %v600
      %v603 = vshrl.u32 %v214, 16
      %v605 = vrot.slane %v603, 4
      %v606 = vshll.u32 %v214, 16
      %v608 = vrot.slane %v606, 5
      %v609 = vor.u32 %v605, %v608
      %v610 = vrot.slane %v609, 4
      %v612 = vshll.u32 %v215, 16
      %v614 = vrot.slane %v612, 5
      %v615 = vsel %vm265, %v610, %v614
      %v616 = vshrl.u32 %v215, 16
      %v618 = vrot.slane %v616, 4
      %v619 = vor.u32 %v618, %v614
      %v620 = vrot.slane %v619, 4
      %v622 = vshll.u32 %v216, 16
      %v624 = vrot.slane %v622, 5
      %v625 = vsel %vm265, %v620, %v624
      %v627 = vshrl.u32 %v217, 16
      %v629 = vrot.slane %v627, 4
      %v630 = vshll.u32 %v217, 16
      %v632 = vrot.slane %v630, 5
      %v633 = vor.u32 %v629, %v632
      %v634 = vrot.slane %v633, 4
      %v636 = vshll.u32 %v218, 16
      %v638 = vrot.slane %v636, 5
      %v639 = vsel %vm265, %v634, %v638
      %v640 = vshrl.u32 %v218, 16
      %v642 = vrot.slane %v640, 4
      %v643 = vor.u32 %v642, %v638
      %v644 = vrot.slane %v643, 4
      %v646 = vshll.u32 %v219, 16
      %v648 = vrot.slane %v646, 5
      %v649 = vsel %vm265, %v644, %v648
      %v651 = vshrl.u32 %v220, 16
      %v653 = vrot.slane %v651, 4
      %v654 = vshll.u32 %v220, 16
      %v656 = vrot.slane %v654, 5
      %v657 = vor.u32 %v653, %v656
      %v658 = vrot.slane %v657, 4
      %v660 = vshll.u32 %v221, 16
      %v662 = vrot.slane %v660, 5
      %v663 = vsel %vm265, %v658, %v662
      %v664 = vshrl.u32 %v221, 16
      %v666 = vrot.slane %v664, 4
      %v667 = vor.u32 %v666, %v662
      %v668 = vrot.slane %v667, 4
      %v670 = vshll.u32 %v222, 16
      %v672 = vrot.slane %v670, 5
      %v673 = vsel %vm265, %v668, %v672
      %v675 = vshrl.u32 %v223, 16
      %v677 = vrot.slane %v675, 4
      %v678 = vshll.u32 %v223, 16
      %v680 = vrot.slane %v678, 5
      %v681 = vor.u32 %v677, %v680
      %v682 = vrot.slane %v681, 4
      %v684 = vshll.u32 %v224, 16
      %v686 = vrot.slane %v684, 5
      %v687 = vsel %vm265, %v682, %v686
      %v688 = vshrl.u32 %v224, 16
      %v690 = vrot.slane %v688, 4
      %v691 = vor.u32 %v690, %v686
      %v692 = vrot.slane %v691, 4
      %v694 = vshll.u32 %v225, 16
      %v696 = vrot.slane %v694, 5
      %v697 = vsel %vm265, %v692, %v696
      %698 = vrot.lane.b32.xlu0 %v279, 4
      %v699 = vpop.permute.xlu0 %698
      %700 = vrot.lane.b32.xlu0 %v289, 4
      %v701 = vpop.permute.xlu0 %700
      %702 = vrot.lane.b32.xlu0 %v303, 4
      %v703 = vpop.permute.xlu0 %702
      %704 = vrot.lane.b32.xlu0 %v313, 4
      %v705 = vpop.permute.xlu0 %704
      %706 = vrot.lane.b32.xlu0 %v327, 4
      %v707 = vpop.permute.xlu0 %706
      %708 = vrot.lane.b32.xlu0 %v337, 4
      %v709 = vpop.permute.xlu0 %708
      %710 = vrot.lane.b32.xlu0 %v351, 4
      %v711 = vpop.permute.xlu0 %710
      %712 = vrot.lane.b32.xlu0 %v361, 4
      %v713 = vpop.permute.xlu0 %712
      %714 = vrot.lane.b32.xlu0 %v375, 4
      %v715 = vpop.permute.xlu0 %714
      %716 = vrot.lane.b32.xlu0 %v385, 4
      %v717 = vpop.permute.xlu0 %716
      %718 = vrot.lane.b32.xlu0 %v399, 4
      %v719 = vpop.permute.xlu0 %718
      %720 = vrot.lane.b32.xlu0 %v409, 4
      %v721 = vpop.permute.xlu0 %720
      %722 = vrot.lane.b32.xlu0 %v423, 4
      %v723 = vpop.permute.xlu0 %722
      %724 = vrot.lane.b32.xlu0 %v433, 4
      %v725 = vpop.permute.xlu0 %724
      %726 = vrot.lane.b32.xlu0 %v447, 4
      %v727 = vpop.permute.xlu0 %726
      %728 = vrot.lane.b32.xlu0 %v457, 4
      %v729 = vpop.permute.xlu0 %728
      %730 = vrot.lane.b32.xlu0 %v471, 4
      %v731 = vpop.permute.xlu0 %730
      %732 = vrot.lane.b32.xlu0 %v481, 4
      %v733 = vpop.permute.xlu0 %732
      %734 = vrot.lane.b32.xlu0 %v495, 4
      %v735 = vpop.permute.xlu0 %734
      %736 = vrot.lane.b32.xlu0 %v505, 4
      %v737 = vpop.permute.xlu0 %736
      %738 = vrot.lane.b32.xlu0 %v519, 4
      %v739 = vpop.permute.xlu0 %738
      %740 = vrot.lane.b32.xlu0 %v529, 4
      %v741 = vpop.permute.xlu0 %740
      %742 = vrot.lane.b32.xlu0 %v543, 4
      %v743 = vpop.permute.xlu0 %742
      %744 = vrot.lane.b32.xlu0 %v553, 4
      %v745 = vpop.permute.xlu0 %744
      %746 = vrot.lane.b32.xlu0 %v567, 4
      %v747 = vpop.permute.xlu0 %746
      %748 = vrot.lane.b32.xlu0 %v577, 4
      %v749 = vpop.permute.xlu0 %748
      %750 = vrot.lane.b32.xlu0 %v591, 4
      %v751 = vpop.permute.xlu0 %750
      %752 = vrot.lane.b32.xlu0 %v601, 4
      %v753 = vpop.permute.xlu0 %752
      %754 = vrot.lane.b32.xlu0 %v615, 4
      %v755 = vpop.permute.xlu0 %754
      %756 = vrot.lane.b32.xlu0 %v625, 4
      %v757 = vpop.permute.xlu0 %756
      %758 = vrot.lane.b32.xlu0 %v639, 4
      %v759 = vpop.permute.xlu0 %758
      %760 = vrot.lane.b32.xlu0 %v649, 4
      %v761 = vpop.permute.xlu0 %760
      %762 = vrot.lane.b32.xlu0 %v663, 4
      %v763 = vpop.permute.xlu0 %762
      %764 = vrot.lane.b32.xlu0 %v673, 4
      %v765 = vpop.permute.xlu0 %764
      %766 = vrot.lane.b32.xlu0 %v687, 4
      %v767 = vpop.permute.xlu0 %766
      %768 = vrot.lane.b32.xlu0 %v697, 4
      %v769 = vpop.permute.xlu0 %768
      %vm806 = vcmask 60448
      %807 = vst.msk [vmem:[#allocation2] sm:$0xf] %vm806, %v699
      %808 = vst.msk [vmem:[#allocation2 + $0x4] sm:$0xf] %vm806, %v701
      %809 = vst.msk [vmem:[#allocation2 + $0x8] sm:$0xf] %vm806, %v703
      %810 = vst.msk [vmem:[#allocation2 + $0xc] sm:$0xf] %vm806, %v705
      %811 = vst.msk [vmem:[#allocation2 + $0x10] sm:$0xf] %vm806, %v707
      %812 = vst.msk [vmem:[#allocation2 + $0x14] sm:$0xf] %vm806, %v709
      %813 = vst.msk [vmem:[#allocation2 + $0x18] sm:$0xf] %vm806, %v711
      %814 = vst.msk [vmem:[#allocation2 + $0x1c] sm:$0xf] %vm806, %v713
      %815 = vst.msk [vmem:[#allocation2 + $0x20] sm:$0xf] %vm806, %v715
      %816 = vst.msk [vmem:[#allocation2 + $0x24] sm:$0xf] %vm806, %v717
      %817 = vst.msk [vmem:[#allocation2 + $0x28] sm:$0xf] %vm806, %v719
      %818 = vst.msk [vmem:[#allocation2 + $0x2c] sm:$0xf] %vm806, %v721
      %819 = vst.msk [vmem:[#allocation2 + $0x30] sm:$0xf] %vm806, %v723
      %820 = vst.msk [vmem:[#allocation2 + $0x34] sm:$0xf] %vm806, %v725
      %821 = vst.msk [vmem:[#allocation2 + $0x38] sm:$0xf] %vm806, %v727
      %822 = vst.msk [vmem:[#allocation2 + $0x3c] sm:$0xf] %vm806, %v729
      %823 = vst.msk [vmem:[#allocation2 + $0x40] sm:$0xf] %vm806, %v731
      %824 = vst.msk [vmem:[#allocation2 + $0x44] sm:$0xf] %vm806, %v733
      %825 = vst.msk [vmem:[#allocation2 + $0x48] sm:$0xf] %vm806, %v735
      %826 = vst.msk [vmem:[#allocation2 + $0x4c] sm:$0xf] %vm806, %v737
      %827 = vst.msk [vmem:[#allocation2 + $0x50] sm:$0xf] %vm806, %v739
      %828 = vst.msk [vmem:[#allocation2 + $0x54] sm:$0xf] %vm806, %v741
      %829 = vst.msk [vmem:[#allocation2 + $0x58] sm:$0xf] %vm806, %v743
      %830 = vst.msk [vmem:[#allocation2 + $0x5c] sm:$0xf] %vm806, %v745
      %831 = vst.msk [vmem:[#allocation2 + $0x60] sm:$0xf] %vm806, %v747
      %832 = vst.msk [vmem:[#allocation2 + $0x64] sm:$0xf] %vm806, %v749
      %833 = vst.msk [vmem:[#allocation2 + $0x68] sm:$0xf] %vm806, %v751
      %834 = vst.msk [vmem:[#allocation2 + $0x6c] sm:$0xf] %vm806, %v753
      %835 = vst.msk [vmem:[#allocation2 + $0x70] sm:$0xf] %vm806, %v755
      %836 = vst.msk [vmem:[#allocation2 + $0x74] sm:$0xf] %vm806, %v757
      %837 = vst.msk [vmem:[#allocation2 + $0x78] sm:$0xf] %vm806, %v759
      %838 = vst.msk [vmem:[#allocation2 + $0x7c] sm:$0xf] %vm806, %v761
      %839 = vst.msk [vmem:[#allocation2 + $0x80] sm:$0xf] %vm806, %v763
      %840 = vst.msk [vmem:[#allocation2 + $0x84] sm:$0xf] %vm806, %v765
      %841 = vst.msk [vmem:[#allocation2 + $0x88] sm:$0xf] %vm806, %v767
      %842 = vst.msk [vmem:[#allocation2 + $0x8c] sm:$0xf] %vm806, %v769
      %vm897 = vcmask 1042432
      %vm898 = vcmask 1046532
      %vm899 = vmor %vm897, %vm898
      %v900 = vrot.slane %v172, 5
      %v901 = vrot.slane %v900, 4
      %v902 = vrot.slane %v173, 5
      %v903 = vsel %vm899, %v901, %v902
      %v904 = vrot.slane %v902, 4
      %v905 = vrot.slane %v174, 5
      %v906 = vsel %vm899, %v904, %v905
      %v907 = vrot.slane %v175, 5
      %v908 = vrot.slane %v907, 4
      %v909 = vrot.slane %v176, 5
      %v910 = vsel %vm899, %v908, %v909
      %v911 = vrot.slane %v909, 4
      %v912 = vrot.slane %v177, 5
      %v913 = vsel %vm899, %v911, %v912
      %v914 = vrot.slane %v178, 5
      %v915 = vrot.slane %v914, 4
      %v916 = vrot.slane %v179, 5
      %v917 = vsel %vm899, %v915, %v916
      %v918 = vrot.slane %v916, 4
      %v919 = vrot.slane %v180, 5
      %v920 = vsel %vm899, %v918, %v919
      %v921 = vrot.slane %v181, 5
      %v922 = vrot.slane %v921, 4
      %v923 = vrot.slane %v182, 5
      %v924 = vsel %vm899, %v922, %v923
      %v925 = vrot.slane %v923, 4
      %v926 = vrot.slane %v183, 5
      %v927 = vsel %vm899, %v925, %v926
      %v928 = vrot.slane %v184, 5
      %v929 = vrot.slane %v928, 4
      %v930 = vrot.slane %v185, 5
      %v931 = vsel %vm899, %v929, %v930
      %v932 = vrot.slane %v930, 4
      %v933 = vrot.slane %v186, 5
      %v934 = vsel %vm899, %v932, %v933
      %v935 = vrot.slane %v187, 5
      %v936 = vrot.slane %v935, 4
      %v937 = vrot.slane %v188, 5
      %v938 = vsel %vm899, %v936, %v937
      %v939 = vrot.slane %v937, 4
      %v940 = vrot.slane %v189, 5
      %v941 = vsel %vm899, %v939, %v940
      %v942 = vrot.slane %v190, 5
      %v943 = vrot.slane %v942, 4
      %v944 = vrot.slane %v191, 5
      %v945 = vsel %vm899, %v943, %v944
      %v946 = vrot.slane %v944, 4
      %v947 = vrot.slane %v192, 5
      %v948 = vsel %vm899, %v946, %v947
      %v949 = vrot.slane %v193, 5
      %v950 = vrot.slane %v949, 4
      %v951 = vrot.slane %v194, 5
      %v952 = vsel %vm899, %v950, %v951
      %v953 = vrot.slane %v951, 4
      %v954 = vrot.slane %v195, 5
      %v955 = vsel %vm899, %v953, %v954
      %v956 = vrot.slane %v196, 5
      %v957 = vrot.slane %v956, 4
      %v958 = vrot.slane %v197, 5
      %v959 = vsel %vm899, %v957, %v958
      %v960 = vrot.slane %v958, 4
      %v961 = vrot.slane %v198, 5
      %v962 = vsel %vm899, %v960, %v961
      %v963 = vrot.slane %v199, 5
      %v964 = vrot.slane %v963, 4
      %v965 = vrot.slane %v200, 5
      %v966 = vsel %vm899, %v964, %v965
      %v967 = vrot.slane %v965, 4
      %v968 = vrot.slane %v201, 5
      %v969 = vsel %vm899, %v967, %v968
      %v970 = vrot.slane %v202, 5
      %v971 = vrot.slane %v970, 4
      %v972 = vrot.slane %v203, 5
      %v973 = vsel %vm899, %v971, %v972
      %v974 = vrot.slane %v972, 4
      %v975 = vrot.slane %v204, 5
      %v976 = vsel %vm899, %v974, %v975
      %v977 = vrot.slane %v205, 5
      %v978 = vrot.slane %v977, 4
      %v979 = vrot.slane %v206, 5
      %v980 = vsel %vm899, %v978, %v979
      %v981 = vrot.slane %v979, 4
      %v982 = vrot.slane %v207, 5
      %v983 = vsel %vm899, %v981, %v982
      %v984 = vrot.slane %v208, 5
      %v985 = vrot.slane %v984, 4
      %v986 = vrot.slane %v209, 5
      %v987 = vsel %vm899, %v985, %v986
      %v988 = vrot.slane %v986, 4
      %v989 = vrot.slane %v210, 5
      %v990 = vsel %vm899, %v988, %v989
      %v991 = vrot.slane %v211, 5
      %v992 = vrot.slane %v991, 4
      %v993 = vrot.slane %v212, 5
      %v994 = vsel %vm899, %v992, %v993
      %v995 = vrot.slane %v993, 4
      %v996 = vrot.slane %v213, 5
      %v997 = vsel %vm899, %v995, %v996
      %v998 = vrot.slane %v214, 5
      %v999 = vrot.slane %v998, 4
      %v1000 = vrot.slane %v215, 5
      %v1001 = vsel %vm899, %v999, %v1000
      %v1002 = vrot.slane %v1000, 4
      %v1003 = vrot.slane %v216, 5
      %v1004 = vsel %vm899, %v1002, %v1003
      %v1005 = vrot.slane %v217, 5
      %v1006 = vrot.slane %v1005, 4
      %v1007 = vrot.slane %v218, 5
      %v1008 = vsel %vm899, %v1006, %v1007
      %v1009 = vrot.slane %v1007, 4
      %v1010 = vrot.slane %v219, 5
      %v1011 = vsel %vm899, %v1009, %v1010
      %v1012 = vrot.slane %v220, 5
      %v1013 = vrot.slane %v1012, 4
      %v1014 = vrot.slane %v221, 5
      %v1015 = vsel %vm899, %v1013, %v1014
      %v1016 = vrot.slane %v1014, 4
      %v1017 = vrot.slane %v222, 5
      %v1018 = vsel %vm899, %v1016, %v1017
      %v1019 = vrot.slane %v223, 5
      %v1020 = vrot.slane %v1019, 4
      %v1021 = vrot.slane %v224, 5
      %v1022 = vsel %vm899, %v1020, %v1021
      %v1023 = vrot.slane %v1021, 4
      %v1024 = vrot.slane %v225, 5
      %v1025 = vsel %vm899, %v1023, %v1024
      %1026 = vrot.lane.b32.xlu0 %v903, 8
      %v1027 = vpop.permute.xlu0 %1026
      %1028 = vrot.lane.b32.xlu0 %v906, 8
      %v1029 = vpop.permute.xlu0 %1028
      %1030 = vrot.lane.b32.xlu0 %v910, 8
      %v1031 = vpop.permute.xlu0 %1030
      %1032 = vrot.lane.b32.xlu0 %v913, 8
      %v1033 = vpop.permute.xlu0 %1032
      %1034 = vrot.lane.b32.xlu0 %v917, 8
      %v1035 = vpop.permute.xlu0 %1034
      %1036 = vrot.lane.b32.xlu0 %v920, 8
      %v1037 = vpop.permute.xlu0 %1036
      %1038 = vrot.lane.b32.xlu0 %v924, 8
      %v1039 = vpop.permute.xlu0 %1038
      %1040 = vrot.lane.b32.xlu0 %v927, 8
      %v1041 = vpop.permute.xlu0 %1040
      %1042 = vrot.lane.b32.xlu0 %v931, 8
      %v1043 = vpop.permute.xlu0 %1042
      %1044 = vrot.lane.b32.xlu0 %v934, 8
      %v1045 = vpop.permute.xlu0 %1044
      %1046 = vrot.lane.b32.xlu0 %v938, 8
      %v1047 = vpop.permute.xlu0 %1046
      %1048 = vrot.lane.b32.xlu0 %v941, 8
      %v1049 = vpop.permute.xlu0 %1048
      %1050 = vrot.lane.b32.xlu0 %v945, 8
      %v1051 = vpop.permute.xlu0 %1050
      %1052 = vrot.lane.b32.xlu0 %v948, 8
      %v1053 = vpop.permute.xlu0 %1052
      %1054 = vrot.lane.b32.xlu0 %v952, 8
      %v1055 = vpop.permute.xlu0 %1054
      %1056 = vrot.lane.b32.xlu0 %v955, 8
      %v1057 = vpop.permute.xlu0 %1056
      %1058 = vrot.lane.b32.xlu0 %v959, 8
      %v1059 = vpop.permute.xlu0 %1058
      %1060 = vrot.lane.b32.xlu0 %v962, 8
      %v1061 = vpop.permute.xlu0 %1060
      %1062 = vrot.lane.b32.xlu0 %v966, 8
      %v1063 = vpop.permute.xlu0 %1062
      %1064 = vrot.lane.b32.xlu0 %v969, 8
      %v1065 = vpop.permute.xlu0 %1064
      %1066 = vrot.lane.b32.xlu0 %v973, 8
      %v1067 = vpop.permute.xlu0 %1066
      %1068 = vrot.lane.b32.xlu0 %v976, 8
      %v1069 = vpop.permute.xlu0 %1068
      %1070 = vrot.lane.b32.xlu0 %v980, 8
      %v1071 = vpop.permute.xlu0 %1070
      %1072 = vrot.lane.b32.xlu0 %v983, 8
      %v1073 = vpop.permute.xlu0 %1072
      %1074 = vrot.lane.b32.xlu0 %v987, 8
      %v1075 = vpop.permute.xlu0 %1074
      %1076 = vrot.lane.b32.xlu0 %v990, 8
      %v1077 = vpop.permute.xlu0 %1076
      %1078 = vrot.lane.b32.xlu0 %v994, 8
      %v1079 = vpop.permute.xlu0 %1078
      %1080 = vrot.lane.b32.xlu0 %v997, 8
      %v1081 = vpop.permute.xlu0 %1080
      %1082 = vrot.lane.b32.xlu0 %v1001, 8
      %v1083 = vpop.permute.xlu0 %1082
      %1084 = vrot.lane.b32.xlu0 %v1004, 8
      %v1085 = vpop.permute.xlu0 %1084
      %1086 = vrot.lane.b32.xlu0 %v1008, 8
      %v1087 = vpop.permute.xlu0 %1086
      %1088 = vrot.lane.b32.xlu0 %v1011, 8
      %v1089 = vpop.permute.xlu0 %1088
      %1090 = vrot.lane.b32.xlu0 %v1015, 8
      %v1091 = vpop.permute.xlu0 %1090
      %1092 = vrot.lane.b32.xlu0 %v1018, 8
      %v1093 = vpop.permute.xlu0 %1092
      %1094 = vrot.lane.b32.xlu0 %v1022, 8
      %v1095 = vpop.permute.xlu0 %1094
      %1096 = vrot.lane.b32.xlu0 %v1025, 8
      %v1097 = vpop.permute.xlu0 %1096
      %vm1134 = vcmask 93248
      %1135 = vst.msk [vmem:[#allocation2] sm:$0xf] %vm1134, %v1027
      %1136 = vst.msk [vmem:[#allocation2 + $0x4] sm:$0xf] %vm1134, %v1029
      %1137 = vst.msk [vmem:[#allocation2 + $0x8] sm:$0xf] %vm1134, %v1031
      %1138 = vst.msk [vmem:[#allocation2 + $0xc] sm:$0xf] %vm1134, %v1033
      %1139 = vst.msk [vmem:[#allocation2 + $0x10] sm:$0xf] %vm1134, %v1035
      %1140 = vst.msk [vmem:[#allocation2 + $0x14] sm:$0xf] %vm1134, %v1037
      %1141 = vst.msk [vmem:[#allocation2 + $0x18] sm:$0xf] %vm1134, %v1039
      %1142 = vst.msk [vmem:[#allocation2 + $0x1c] sm:$0xf] %vm1134, %v1041
      %1143 = vst.msk [vmem:[#allocation2 + $0x20] sm:$0xf] %vm1134, %v1043
      %1144 = vst.msk [vmem:[#allocation2 + $0x24] sm:$0xf] %vm1134, %v1045
      %1145 = vst.msk [vmem:[#allocation2 + $0x28] sm:$0xf] %vm1134, %v1047
      %1146 = vst.msk [vmem:[#allocation2 + $0x2c] sm:$0xf] %vm1134, %v1049
      %1147 = vst.msk [vmem:[#allocation2 + $0x30] sm:$0xf] %vm1134, %v1051
      %1148 = vst.msk [vmem:[#allocation2 + $0x34] sm:$0xf] %vm1134, %v1053
      %1149 = vst.msk [vmem:[#allocation2 + $0x38] sm:$0xf] %vm1134, %v1055
      %1150 = vst.msk [vmem:[#allocation2 + $0x3c] sm:$0xf] %vm1134, %v1057
      %1151 = vst.msk [vmem:[#allocation2 + $0x40] sm:$0xf] %vm1134, %v1059
      %1152 = vst.msk [vmem:[#allocation2 + $0x44] sm:$0xf] %vm1134, %v1061
      %1153 = vst.msk [vmem:[#allocation2 + $0x48] sm:$0xf] %vm1134, %v1063
      %1154 = vst.msk [vmem:[#allocation2 + $0x4c] sm:$0xf] %vm1134, %v1065
      %1155 = vst.msk [vmem:[#allocation2 + $0x50] sm:$0xf] %vm1134, %v1067
      %1156 = vst.msk [vmem:[#allocation2 + $0x54] sm:$0xf] %vm1134, %v1069
      %1157 = vst.msk [vmem:[#allocation2 + $0x58] sm:$0xf] %vm1134, %v1071
      %1158 = vst.msk [vmem:[#allocation2 + $0x5c] sm:$0xf] %vm1134, %v1073
      %1159 = vst.msk [vmem:[#allocation2 + $0x60] sm:$0xf] %vm1134, %v1075
      %1160 = vst.msk [vmem:[#allocation2 + $0x64] sm:$0xf] %vm1134, %v1077
      %1161 = vst.msk [vmem:[#allocation2 + $0x68] sm:$0xf] %vm1134, %v1079
      %1162 = vst.msk [vmem:[#allocation2 + $0x6c] sm:$0xf] %vm1134, %v1081
      %1163 = vst.msk [vmem:[#allocation2 + $0x70] sm:$0xf] %vm1134, %v1083
      %1164 = vst.msk [vmem:[#allocation2 + $0x74] sm:$0xf] %vm1134, %v1085
      %1165 = vst.msk [vmem:[#allocation2 + $0x78] sm:$0xf] %vm1134, %v1087
      %1166 = vst.msk [vmem:[#allocation2 + $0x7c] sm:$0xf] %vm1134, %v1089
      %1167 = vst.msk [vmem:[#allocation2 + $0x80] sm:$0xf] %vm1134, %v1091
      %1168 = vst.msk [vmem:[#allocation2 + $0x84] sm:$0xf] %vm1134, %v1093
      %1169 = vst.msk [vmem:[#allocation2 + $0x88] sm:$0xf] %vm1134, %v1095
      %1170 = vst.msk [vmem:[#allocation2 + $0x8c] sm:$0xf] %vm1134, %v1097
      %v1171 = vld [vmem:[#allocation2] sm:$0xf]
      %v1172 = vld [vmem:[#allocation2 + $0x4] sm:$0xf]
      %v1173 = vld [vmem:[#allocation2 + $0x8] sm:$0xf]
      %v1174 = vld [vmem:[#allocation2 + $0xc] sm:$0xf]
      %v1175 = vld [vmem:[#allocation2 + $0x10] sm:$0xf]
      %v1176 = vld [vmem:[#allocation2 + $0x14] sm:$0xf]
      %v1177 = vld [vmem:[#allocation2 + $0x18] sm:$0xf]
      %v1178 = vld [vmem:[#allocation2 + $0x1c] sm:$0xf]
      %v1179 = vld [vmem:[#allocation2 + $0x20] sm:$0xf]
      %v1180 = vld [vmem:[#allocation2 + $0x24] sm:$0xf]
      %v1181 = vld [vmem:[#allocation2 + $0x28] sm:$0xf]
      %v1182 = vld [vmem:[#allocation2 + $0x2c] sm:$0xf]
      %v1183 = vld [vmem:[#allocation2 + $0x30] sm:$0xf]
      %v1184 = vld [vmem:[#allocation2 + $0x34] sm:$0xf]
      %v1185 = vld [vmem:[#allocation2 + $0x38] sm:$0xf]
      %v1186 = vld [vmem:[#allocation2 + $0x3c] sm:$0xf]
      %v1187 = vld [vmem:[#allocation2 + $0x40] sm:$0xf]
      %v1188 = vld [vmem:[#allocation2 + $0x44] sm:$0xf]
      %v1189 = vld [vmem:[#allocation2 + $0x48] sm:$0xf]
      %v1190 = vld [vmem:[#allocation2 + $0x4c] sm:$0xf]
      %v1191 = vld [vmem:[#allocation2 + $0x50] sm:$0xf]
      %v1192 = vld [vmem:[#allocation2 + $0x54] sm:$0xf]
      %v1193 = vld [vmem:[#allocation2 + $0x58] sm:$0xf]
      %v1194 = vld [vmem:[#allocation2 + $0x5c] sm:$0xf]
      %v1195 = vld [vmem:[#allocation2 + $0x60] sm:$0xf]
      %v1196 = vld [vmem:[#allocation2 + $0x64] sm:$0xf]
      %v1197 = vld [vmem:[#allocation2 + $0x68] sm:$0xf]
      %v1198 = vld [vmem:[#allocation2 + $0x6c] sm:$0xf]
      %v1199 = vld [vmem:[#allocation2 + $0x70] sm:$0xf]
      %v1200 = vld [vmem:[#allocation2 + $0x74] sm:$0xf]
      %v1201 = vld [vmem:[#allocation2 + $0x78] sm:$0xf]
      %v1202 = vld [vmem:[#allocation2 + $0x7c] sm:$0xf]
      %v1203 = vld [vmem:[%s1] sm:$0xf]
      %v1204 = vld [vmem:[%s1 + $0x4] sm:$0x3]
      %s1205 = scalar_lea.vmem [#allocation2], 8
      %v1206 = vld [vmem:[%s1205] sm:$0xf]
      %v1207 = vld [vmem:[%s1205 + $0x4] sm:$0xf]
      %v1208 = vld [vmem:[%s1205 + $0x8] sm:$0xf]
      %v1209 = vld [vmem:[%s1205 + $0xc] sm:$0xf]
      %v1210 = vld [vmem:[%s1205 + $0x10] sm:$0xf]
      %v1211 = vld [vmem:[%s1205 + $0x14] sm:$0xf]
      %v1212 = vld [vmem:[%s1205 + $0x18] sm:$0xf]
      %v1213 = vld [vmem:[%s1205 + $0x1c] sm:$0xf]
      %v1214 = vld [vmem:[%s1205 + $0x20] sm:$0xf]
      %v1215 = vld [vmem:[%s1205 + $0x24] sm:$0xf]
      %v1216 = vld [vmem:[%s1205 + $0x28] sm:$0xf]
      %v1217 = vld [vmem:[%s1205 + $0x2c] sm:$0xf]
      %v1218 = vld [vmem:[%s1205 + $0x30] sm:$0xf]
      %v1219 = vld [vmem:[%s1205 + $0x34] sm:$0xf]
      %v1220 = vld [vmem:[%s1205 + $0x38] sm:$0xf]
      %v1221 = vld [vmem:[%s1205 + $0x3c] sm:$0xf]
      %v1222 = vld [vmem:[%s1205 + $0x40] sm:$0xf]
      %v1223 = vld [vmem:[%s1205 + $0x44] sm:$0xf]
      %v1224 = vld [vmem:[%s1205 + $0x48] sm:$0xf]
      %v1225 = vld [vmem:[%s1205 + $0x4c] sm:$0xf]
      %v1226 = vld [vmem:[%s1205 + $0x50] sm:$0xf]
      %v1227 = vld [vmem:[%s1205 + $0x54] sm:$0xf]
      %v1228 = vld [vmem:[%s1205 + $0x58] sm:$0xf]
      %v1229 = vld [vmem:[%s1205 + $0x5c] sm:$0xf]
      %v1230 = vld [vmem:[%s1205 + $0x60] sm:$0xf]
      %v1231 = vld [vmem:[%s1205 + $0x64] sm:$0xf]
      %v1232 = vld [vmem:[%s1205 + $0x68] sm:$0xf]
      %v1233 = vld [vmem:[%s1205 + $0x6c] sm:$0xf]
      %v1234 = vld [vmem:[%s1205 + $0x70] sm:$0xf]
      %v1235 = vld [vmem:[%s1205 + $0x74] sm:$0xf]
      %v1236 = vld [vmem:[%s1205 + $0x78] sm:$0xf]
      %v1237 = vld [vmem:[%s1205 + $0x7c] sm:$0xf]
      %s1238 = scalar_lea.vmem %s1, 8
      %v1239 = vld [vmem:[%s1238] sm:$0xf]
      %v1240 = vld [vmem:[%s1238 + $0x4] sm:$0x3]
      %v1273 = vunpack.c.l.b16 %v1206
      %v1274 = vunpack.c.l.b16 %v1207
      %v1275 = vunpack.c.l.b16 %v1208
      %v1276 = vunpack.c.l.b16 %v1209
      %v1277 = vunpack.c.l.b16 %v1210
      %v1278 = vunpack.c.l.b16 %v1211
      %v1279 = vunpack.c.l.b16 %v1212
      %v1280 = vunpack.c.l.b16 %v1213
      %v1281 = vunpack.c.l.b16 %v1214
      %v1282 = vunpack.c.l.b16 %v1215
      %v1283 = vunpack.c.l.b16 %v1216
      %v1284 = vunpack.c.l.b16 %v1217
      %v1285 = vunpack.c.l.b16 %v1218
      %v1286 = vunpack.c.l.b16 %v1219
      %v1287 = vunpack.c.l.b16 %v1220
      %v1288 = vunpack.c.l.b16 %v1221
      %v1289 = vunpack.c.l.b16 %v1222
      %v1290 = vunpack.c.l.b16 %v1223
      %v1291 = vunpack.c.l.b16 %v1224
      %v1292 = vunpack.c.l.b16 %v1225
      %v1293 = vunpack.c.l.b16 %v1226
      %v1294 = vunpack.c.l.b16 %v1227
      %v1295 = vunpack.c.l.b16 %v1228
      %v1296 = vunpack.c.l.b16 %v1229
      %v1297 = vunpack.c.l.b16 %v1230
      %v1298 = vunpack.c.l.b16 %v1231
      %v1299 = vunpack.c.l.b16 %v1232
      %v1300 = vunpack.c.l.b16 %v1233
      %v1301 = vunpack.c.l.b16 %v1234
      %v1302 = vunpack.c.l.b16 %v1235
      %v1303 = vunpack.c.l.b16 %v1236
      %v1304 = vunpack.c.l.b16 %v1237
      %v1305 = vpack.c.b16 %v1274, %v1273
      %v1306 = vpack.c.b16 %v1276, %v1275
      %v1307 = vpack.c.b16 %v1278, %v1277
      %v1308 = vpack.c.b16 %v1280, %v1279
      %v1309 = vpack.c.b16 %v1282, %v1281
      %v1310 = vpack.c.b16 %v1284, %v1283
      %v1311 = vpack.c.b16 %v1286, %v1285
      %v1312 = vpack.c.b16 %v1288, %v1287
      %v1313 = vpack.c.b16 %v1290, %v1289
      %v1314 = vpack.c.b16 %v1292, %v1291
      %v1315 = vpack.c.b16 %v1294, %v1293
      %v1316 = vpack.c.b16 %v1296, %v1295
      %v1317 = vpack.c.b16 %v1298, %v1297
      %v1318 = vpack.c.b16 %v1300, %v1299
      %v1319 = vpack.c.b16 %v1302, %v1301
      %v1320 = vpack.c.b16 %v1304, %v1303
      %v1323 = vunpack.c.l.b16 %v1239
      %v1324 = vunpack.c.l.b16 %v1240
      %v1325 = vpack.c.b16 %v1324, %v1323
      %vm1326 = vcmask 97280
      %v1328 = vsel %vm1326, %v1305, 0
      %v1331 = vsel %vm1326, %v1306, 0
      %v1334 = vsel %vm1326, %v1307, 0
      %v1337 = vsel %vm1326, %v1308, 0
      %v1340 = vsel %vm1326, %v1309, 0
      %v1343 = vsel %vm1326, %v1310, 0
      %v1346 = vsel %vm1326, %v1311, 0
      %v1349 = vsel %vm1326, %v1312, 0
      %v1352 = vsel %vm1326, %v1313, 0
      %v1355 = vsel %vm1326, %v1314, 0
      %v1358 = vsel %vm1326, %v1315, 0
      %v1361 = vsel %vm1326, %v1316, 0
      %v1364 = vsel %vm1326, %v1317, 0
      %v1367 = vsel %vm1326, %v1318, 0
      %v1370 = vsel %vm1326, %v1319, 0
      %v1373 = vsel %vm1326, %v1320, 0
      %vm1375 = vcmask 1045504
      %v1377 = vsel %vm1375, %v1325, 0
      %1379 = vmatpush.bf16.msra.mxu0 0
      %1380 = vmatpush.bf16.msra.mxu0 0
      %1381 = vmatpush.bf16.msra.mxu0 0
      %1382 = vmatpush.bf16.msra.mxu0 0
      %1383 = vmatpush.bf16.msra.mxu0 0
      %1384 = vmatpush.bf16.msra.mxu0 0
      %1385 = vmatpush.bf16.msra.mxu0 0
      %1386 = vmatpush.bf16.msra.mxu0 %v1377
      %1387 = vmatmul.bf16.gmra.mxu0 %v1328
      %v1388 = vpop.f32.mrf.mxu0
      %v1389 = vadd.f32 0.0, %v1388
      %v1390 = vpop.f32.mrf.mxu0
      %v1391 = vadd.f32 0.0, %v1390
      %1392 = vmatmul.bf16.gmra.mxu0 %v1331
      %v1393 = vpop.f32.mrf.mxu0
      %v1394 = vadd.f32 0.0, %v1393
      %v1395 = vpop.f32.mrf.mxu0
      %v1396 = vadd.f32 0.0, %v1395
      %1397 = vmatmul.bf16.gmra.mxu0 %v1334
      %v1398 = vpop.f32.mrf.mxu0
      %v1399 = vadd.f32 0.0, %v1398
      %v1400 = vpop.f32.mrf.mxu0
      %v1401 = vadd.f32 0.0, %v1400
      %1402 = vmatmul.bf16.gmra.mxu0 %v1337
      %v1403 = vpop.f32.mrf.mxu0
      %v1404 = vadd.f32 0.0, %v1403
      %v1405 = vpop.f32.mrf.mxu0
      %v1406 = vadd.f32 0.0, %v1405
      %1407 = vmatmul.bf16.gmra.mxu0 %v1340
      %v1408 = vpop.f32.mrf.mxu0
      %v1409 = vadd.f32 0.0, %v1408
      %v1410 = vpop.f32.mrf.mxu0
      %v1411 = vadd.f32 0.0, %v1410
      %1412 = vmatmul.bf16.gmra.mxu0 %v1343
      %v1413 = vpop.f32.mrf.mxu0
      %v1414 = vadd.f32 0.0, %v1413
      %v1415 = vpop.f32.mrf.mxu0
      %v1416 = vadd.f32 0.0, %v1415
      %1417 = vmatmul.bf16.gmra.mxu0 %v1346
      %v1418 = vpop.f32.mrf.mxu0
      %v1419 = vadd.f32 0.0, %v1418
      %v1420 = vpop.f32.mrf.mxu0
      %v1421 = vadd.f32 0.0, %v1420
      %1422 = vmatmul.bf16.gmra.mxu0 %v1349
      %v1423 = vpop.f32.mrf.mxu0
      %v1424 = vadd.f32 0.0, %v1423
      %v1425 = vpop.f32.mrf.mxu0
      %v1426 = vadd.f32 0.0, %v1425
      %1427 = vmatmul.bf16.gmra.mxu0 %v1352
      %v1428 = vpop.f32.mrf.mxu0
      %v1429 = vadd.f32 0.0, %v1428
      %v1430 = vpop.f32.mrf.mxu0
      %v1431 = vadd.f32 0.0, %v1430
      %1432 = vmatmul.bf16.gmra.mxu0 %v1355
      %v1433 = vpop.f32.mrf.mxu0
      %v1434 = vadd.f32 0.0, %v1433
      %v1435 = vpop.f32.mrf.mxu0
      %v1436 = vadd.f32 0.0, %v1435
      %1437 = vmatmul.bf16.gmra.mxu0 %v1358
      %v1438 = vpop.f32.mrf.mxu0
      %v1439 = vadd.f32 0.0, %v1438
      %v1440 = vpop.f32.mrf.mxu0
      %v1441 = vadd.f32 0.0, %v1440
      %1442 = vmatmul.bf16.gmra.mxu0 %v1361
      %v1443 = vpop.f32.mrf.mxu0
      %v1444 = vadd.f32 0.0, %v1443
      %v1445 = vpop.f32.mrf.mxu0
      %v1446 = vadd.f32 0.0, %v1445
      %1447 = vmatmul.bf16.gmra.mxu0 %v1364
      %v1448 = vpop.f32.mrf.mxu0
      %v1449 = vadd.f32 0.0, %v1448
      %v1450 = vpop.f32.mrf.mxu0
      %v1451 = vadd.f32 0.0, %v1450
      %1452 = vmatmul.bf16.gmra.mxu0 %v1367
      %v1453 = vpop.f32.mrf.mxu0
      %v1454 = vadd.f32 0.0, %v1453
      %v1455 = vpop.f32.mrf.mxu0
      %v1456 = vadd.f32 0.0, %v1455
      %1457 = vmatmul.bf16.gmra.mxu0 %v1370
      %v1458 = vpop.f32.mrf.mxu0
      %v1459 = vadd.f32 0.0, %v1458
      %v1460 = vpop.f32.mrf.mxu0
      %v1461 = vadd.f32 0.0, %v1460
      %1462 = vmatmul.bf16.gmra.mxu0 %v1373
      %v1463 = vpop.f32.mrf.mxu0
      %v1464 = vadd.f32 0.0, %v1463
      %v1465 = vpop.f32.mrf.mxu0
      %v1466 = vadd.f32 0.0, %v1465
      %1467 = vdwg.mxu0
      %v1500 = vunpack.c.l.b16 %v1171
      %v1501 = vunpack.c.l.b16 %v1172
      %v1502 = vunpack.c.l.b16 %v1173
      %v1503 = vunpack.c.l.b16 %v1174
      %v1504 = vunpack.c.l.b16 %v1175
      %v1505 = vunpack.c.l.b16 %v1176
      %v1506 = vunpack.c.l.b16 %v1177
      %v1507 = vunpack.c.l.b16 %v1178
      %v1508 = vunpack.c.l.b16 %v1179
      %v1509 = vunpack.c.l.b16 %v1180
      %v1510 = vunpack.c.l.b16 %v1181
      %v1511 = vunpack.c.l.b16 %v1182
      %v1512 = vunpack.c.l.b16 %v1183
      %v1513 = vunpack.c.l.b16 %v1184
      %v1514 = vunpack.c.l.b16 %v1185
      %v1515 = vunpack.c.l.b16 %v1186
      %v1516 = vunpack.c.l.b16 %v1187
      %v1517 = vunpack.c.l.b16 %v1188
      %v1518 = vunpack.c.l.b16 %v1189
      %v1519 = vunpack.c.l.b16 %v1190
      %v1520 = vunpack.c.l.b16 %v1191
      %v1521 = vunpack.c.l.b16 %v1192
      %v1522 = vunpack.c.l.b16 %v1193
      %v1523 = vunpack.c.l.b16 %v1194
      %v1524 = vunpack.c.l.b16 %v1195
      %v1525 = vunpack.c.l.b16 %v1196
      %v1526 = vunpack.c.l.b16 %v1197
      %v1527 = vunpack.c.l.b16 %v1198
      %v1528 = vunpack.c.l.b16 %v1199
      %v1529 = vunpack.c.l.b16 %v1200
      %v1530 = vunpack.c.l.b16 %v1201
      %v1531 = vunpack.c.l.b16 %v1202
      %v1532 = vpack.c.b16 %v1501, %v1500
      %v1533 = vpack.c.b16 %v1503, %v1502
      %v1534 = vpack.c.b16 %v1505, %v1504
      %v1535 = vpack.c.b16 %v1507, %v1506
      %v1536 = vpack.c.b16 %v1509, %v1508
      %v1537 = vpack.c.b16 %v1511, %v1510
      %v1538 = vpack.c.b16 %v1513, %v1512
      %v1539 = vpack.c.b16 %v1515, %v1514
      %v1540 = vpack.c.b16 %v1517, %v1516
      %v1541 = vpack.c.b16 %v1519, %v1518
      %v1542 = vpack.c.b16 %v1521, %v1520
      %v1543 = vpack.c.b16 %v1523, %v1522
      %v1544 = vpack.c.b16 %v1525, %v1524
      %v1545 = vpack.c.b16 %v1527, %v1526
      %v1546 = vpack.c.b16 %v1529, %v1528
      %v1547 = vpack.c.b16 %v1531, %v1530
      %v1550 = vunpack.c.l.b16 %v1203
      %v1551 = vunpack.c.l.b16 %v1204
      %v1552 = vpack.c.b16 %v1551, %v1550
      %v1554 = vsel %vm1326, %v1532, 0
      %v1557 = vsel %vm1326, %v1533, 0
      %v1560 = vsel %vm1326, %v1534, 0
      %v1563 = vsel %vm1326, %v1535, 0
      %v1566 = vsel %vm1326, %v1536, 0
      %v1569 = vsel %vm1326, %v1537, 0
      %v1572 = vsel %vm1326, %v1538, 0
      %v1575 = vsel %vm1326, %v1539, 0
      %v1578 = vsel %vm1326, %v1540, 0
      %v1581 = vsel %vm1326, %v1541, 0
      %v1584 = vsel %vm1326, %v1542, 0
      %v1587 = vsel %vm1326, %v1543, 0
      %v1590 = vsel %vm1326, %v1544, 0
      %v1593 = vsel %vm1326, %v1545, 0
      %v1596 = vsel %vm1326, %v1546, 0
      %v1599 = vsel %vm1326, %v1547, 0
      %v1602 = vsel %vm1375, %v1552, 0
      %1604 = vmatpush.bf16.msra.mxu0 0
      %1605 = vmatpush.bf16.msra.mxu0 0
      %1606 = vmatpush.bf16.msra.mxu0 0
      %1607 = vmatpush.bf16.msra.mxu0 0
      %1608 = vmatpush.bf16.msra.mxu0 0
      %1609 = vmatpush.bf16.msra.mxu0 0
      %1610 = vmatpush.bf16.msra.mxu0 0
      %1611 = vmatpush.bf16.msra.mxu0 %v1602
      %1612 = vmatmul.bf16.gmra.mxu0 %v1554
      %v1613 = vpop.f32.mrf.mxu0
      %v1614 = vadd.f32 %v1389, %v1613
      %v1615 = vpop.f32.mrf.mxu0
      %v1616 = vadd.f32 %v1391, %v1615
      %1617 = vmatmul.bf16.gmra.mxu0 %v1557
      %v1618 = vpop.f32.mrf.mxu0
      %v1619 = vadd.f32 %v1394, %v1618
      %v1620 = vpop.f32.mrf.mxu0
      %v1621 = vadd.f32 %v1396, %v1620
      %1622 = vmatmul.bf16.gmra.mxu0 %v1560
      %v1623 = vpop.f32.mrf.mxu0
      %v1624 = vadd.f32 %v1399, %v1623
      %v1625 = vpop.f32.mrf.mxu0
      %v1626 = vadd.f32 %v1401, %v1625
      %1627 = vmatmul.bf16.gmra.mxu0 %v1563
      %v1628 = vpop.f32.mrf.mxu0
      %v1629 = vadd.f32 %v1404, %v1628
      %v1630 = vpop.f32.mrf.mxu0
      %v1631 = vadd.f32 %v1406, %v1630
      %1632 = vmatmul.bf16.gmra.mxu0 %v1566
      %v1633 = vpop.f32.mrf.mxu0
      %v1634 = vadd.f32 %v1409, %v1633
      %v1635 = vpop.f32.mrf.mxu0
      %v1636 = vadd.f32 %v1411, %v1635
      %1637 = vmatmul.bf16.gmra.mxu0 %v1569
      %v1638 = vpop.f32.mrf.mxu0
      %v1639 = vadd.f32 %v1414, %v1638
      %v1640 = vpop.f32.mrf.mxu0
      %v1641 = vadd.f32 %v1416, %v1640
      %1642 = vmatmul.bf16.gmra.mxu0 %v1572
      %v1643 = vpop.f32.mrf.mxu0
      %v1644 = vadd.f32 %v1419, %v1643
      %v1645 = vpop.f32.mrf.mxu0
      %v1646 = vadd.f32 %v1421, %v1645
      %1647 = vmatmul.bf16.gmra.mxu0 %v1575
      %v1648 = vpop.f32.mrf.mxu0
      %v1649 = vadd.f32 %v1424, %v1648
      %v1650 = vpop.f32.mrf.mxu0
      %v1651 = vadd.f32 %v1426, %v1650
      %1652 = vmatmul.bf16.gmra.mxu0 %v1578
      %v1653 = vpop.f32.mrf.mxu0
      %v1654 = vadd.f32 %v1429, %v1653
      %v1655 = vpop.f32.mrf.mxu0
      %v1656 = vadd.f32 %v1431, %v1655
      %1657 = vmatmul.bf16.gmra.mxu0 %v1581
      %v1658 = vpop.f32.mrf.mxu0
      %v1659 = vadd.f32 %v1434, %v1658
      %v1660 = vpop.f32.mrf.mxu0
      %v1661 = vadd.f32 %v1436, %v1660
      %1662 = vmatmul.bf16.gmra.mxu0 %v1584
      %v1663 = vpop.f32.mrf.mxu0
      %v1664 = vadd.f32 %v1439, %v1663
      %v1665 = vpop.f32.mrf.mxu0
      %v1666 = vadd.f32 %v1441, %v1665
      %1667 = vmatmul.bf16.gmra.mxu0 %v1587
      %v1668 = vpop.f32.mrf.mxu0
      %v1669 = vadd.f32 %v1444, %v1668
      %v1670 = vpop.f32.mrf.mxu0
      %v1671 = vadd.f32 %v1446, %v1670
      %1672 = vmatmul.bf16.gmra.mxu0 %v1590
      %v1673 = vpop.f32.mrf.mxu0
      %v1674 = vadd.f32 %v1449, %v1673
      %v1675 = vpop.f32.mrf.mxu0
      %v1676 = vadd.f32 %v1451, %v1675
      %1677 = vmatmul.bf16.gmra.mxu0 %v1593
      %v1678 = vpop.f32.mrf.mxu0
      %v1679 = vadd.f32 %v1454, %v1678
      %v1680 = vpop.f32.mrf.mxu0
      %v1681 = vadd.f32 %v1456, %v1680
      %1682 = vmatmul.bf16.gmra.mxu0 %v1596
      %v1683 = vpop.f32.mrf.mxu0
      %v1684 = vadd.f32 %v1459, %v1683
      %v1685 = vpop.f32.mrf.mxu0
      %v1686 = vadd.f32 %v1461, %v1685
      %1687 = vmatmul.bf16.gmra.mxu0 %v1599
      %v1688 = vpop.f32.mrf.mxu0
      %v1689 = vadd.f32 %v1464, %v1688
      %v1690 = vpop.f32.mrf.mxu0
      %v1691 = vadd.f32 %v1466, %v1690
      %1692 = vdwg.mxu0
      %s1693 = scalar_lea.vmem [#allocation2], 16
      %v1694 = vld [vmem:[%s1693] sm:$0xf]
      %v1695 = vld [vmem:[%s1693 + $0x4] sm:$0xf]
      %v1696 = vld [vmem:[%s1693 + $0x8] sm:$0xf]
      %v1697 = vld [vmem:[%s1693 + $0xc] sm:$0xf]
      %v1698 = vld [vmem:[%s1693 + $0x10] sm:$0xf]
      %v1699 = vld [vmem:[%s1693 + $0x14] sm:$0xf]
      %v1700 = vld [vmem:[%s1693 + $0x18] sm:$0xf]
      %v1701 = vld [vmem:[%s1693 + $0x1c] sm:$0xf]
      %v1702 = vld [vmem:[%s1693 + $0x20] sm:$0xf]
      %v1703 = vld [vmem:[%s1693 + $0x24] sm:$0xf]
      %v1704 = vld [vmem:[%s1693 + $0x28] sm:$0xf]
      %v1705 = vld [vmem:[%s1693 + $0x2c] sm:$0xf]
      %v1706 = vld [vmem:[%s1693 + $0x30] sm:$0xf]
      %v1707 = vld [vmem:[%s1693 + $0x34] sm:$0xf]
      %v1708 = vld [vmem:[%s1693 + $0x38] sm:$0xf]
      %v1709 = vld [vmem:[%s1693 + $0x3c] sm:$0xf]
      %v1710 = vld [vmem:[%s1693 + $0x40] sm:$0xf]
      %v1711 = vld [vmem:[%s1693 + $0x44] sm:$0xf]
      %v1712 = vld [vmem:[%s1693 + $0x48] sm:$0xf]
      %v1713 = vld [vmem:[%s1693 + $0x4c] sm:$0xf]
      %v1714 = vld [vmem:[%s1693 + $0x50] sm:$0xf]
      %v1715 = vld [vmem:[%s1693 + $0x54] sm:$0xf]
      %v1716 = vld [vmem:[%s1693 + $0x58] sm:$0xf]
      %v1717 = vld [vmem:[%s1693 + $0x5c] sm:$0xf]
      %v1718 = vld [vmem:[%s1693 + $0x60] sm:$0xf]
      %v1719 = vld [vmem:[%s1693 + $0x64] sm:$0xf]
      %v1720 = vld [vmem:[%s1693 + $0x68] sm:$0xf]
      %v1721 = vld [vmem:[%s1693 + $0x6c] sm:$0xf]
      %v1722 = vld [vmem:[%s1693 + $0x70] sm:$0xf]
      %v1723 = vld [vmem:[%s1693 + $0x74] sm:$0xf]
      %v1724 = vld [vmem:[%s1693 + $0x78] sm:$0xf]
      %v1725 = vld [vmem:[%s1693 + $0x7c] sm:$0xf]
      %s1726 = scalar_lea.vmem %s1, 16
      %v1727 = vld [vmem:[%s1726] sm:$0xf]
      %v1728 = vld [vmem:[%s1726 + $0x4] sm:$0x3]
      %v1761 = vunpack.c.l.b16 %v1694
      %v1762 = vunpack.c.l.b16 %v1695
      %v1763 = vunpack.c.l.b16 %v1696
      %v1764 = vunpack.c.l.b16 %v1697
      %v1765 = vunpack.c.l.b16 %v1698
      %v1766 = vunpack.c.l.b16 %v1699
      %v1767 = vunpack.c.l.b16 %v1700
      %v1768 = vunpack.c.l.b16 %v1701
      %v1769 = vunpack.c.l.b16 %v1702
      %v1770 = vunpack.c.l.b16 %v1703
      %v1771 = vunpack.c.l.b16 %v1704
      %v1772 = vunpack.c.l.b16 %v1705
      %v1773 = vunpack.c.l.b16 %v1706
      %v1774 = vunpack.c.l.b16 %v1707
      %v1775 = vunpack.c.l.b16 %v1708
      %v1776 = vunpack.c.l.b16 %v1709
      %v1777 = vunpack.c.l.b16 %v1710
      %v1778 = vunpack.c.l.b16 %v1711
      %v1779 = vunpack.c.l.b16 %v1712
      %v1780 = vunpack.c.l.b16 %v1713
      %v1781 = vunpack.c.l.b16 %v1714
      %v1782 = vunpack.c.l.b16 %v1715
      %v1783 = vunpack.c.l.b16 %v1716
      %v1784 = vunpack.c.l.b16 %v1717
      %v1785 = vunpack.c.l.b16 %v1718
      %v1786 = vunpack.c.l.b16 %v1719
      %v1787 = vunpack.c.l.b16 %v1720
      %v1788 = vunpack.c.l.b16 %v1721
      %v1789 = vunpack.c.l.b16 %v1722
      %v1790 = vunpack.c.l.b16 %v1723
      %v1791 = vunpack.c.l.b16 %v1724
      %v1792 = vunpack.c.l.b16 %v1725
      %v1793 = vpack.c.b16 %v1762, %v1761
      %v1794 = vpack.c.b16 %v1764, %v1763
      %v1795 = vpack.c.b16 %v1766, %v1765
      %v1796 = vpack.c.b16 %v1768, %v1767
      %v1797 = vpack.c.b16 %v1770, %v1769
      %v1798 = vpack.c.b16 %v1772, %v1771
      %v1799 = vpack.c.b16 %v1774, %v1773
      %v1800 = vpack.c.b16 %v1776, %v1775
      %v1801 = vpack.c.b16 %v1778, %v1777
      %v1802 = vpack.c.b16 %v1780, %v1779
      %v1803 = vpack.c.b16 %v1782, %v1781
      %v1804 = vpack.c.b16 %v1784, %v1783
      %v1805 = vpack.c.b16 %v1786, %v1785
      %v1806 = vpack.c.b16 %v1788, %v1787
      %v1807 = vpack.c.b16 %v1790, %v1789
      %v1808 = vpack.c.b16 %v1792, %v1791
      %v1811 = vunpack.c.l.b16 %v1727
      %v1812 = vunpack.c.l.b16 %v1728
      %v1813 = vpack.c.b16 %v1812, %v1811
      %v1815 = vsel %vm1326, %v1793, 0
      %v1818 = vsel %vm1326, %v1794, 0
      %v1821 = vsel %vm1326, %v1795, 0
      %v1824 = vsel %vm1326, %v1796, 0
      %v1827 = vsel %vm1326, %v1797, 0
      %v1830 = vsel %vm1326, %v1798, 0
      %v1833 = vsel %vm1326, %v1799, 0
      %v1836 = vsel %vm1326, %v1800, 0
      %v1839 = vsel %vm1326, %v1801, 0
      %v1842 = vsel %vm1326, %v1802, 0
      %v1845 = vsel %vm1326, %v1803, 0
      %v1848 = vsel %vm1326, %v1804, 0
      %v1851 = vsel %vm1326, %v1805, 0
      %v1854 = vsel %vm1326, %v1806, 0
      %v1857 = vsel %vm1326, %v1807, 0
      %v1860 = vsel %vm1326, %v1808, 0
      %v1863 = vsel %vm1375, %v1813, 0
      %1865 = vmatpush.bf16.msra.mxu0 0
      %1866 = vmatpush.bf16.msra.mxu0 0
      %1867 = vmatpush.bf16.msra.mxu0 0
      %1868 = vmatpush.bf16.msra.mxu0 0
      %1869 = vmatpush.bf16.msra.mxu0 0
      %1870 = vmatpush.bf16.msra.mxu0 0
      %1871 = vmatpush.bf16.msra.mxu0 0
      %1872 = vmatpush.bf16.msra.mxu0 %v1863
      %1873 = vmatmul.bf16.gmra.mxu0 %v1815
      %v1874 = vpop.f32.mrf.mxu0
      %v1875 = vadd.f32 0.0, %v1874
      %v1876 = vpop.f32.mrf.mxu0
      %v1877 = vadd.f32 0.0, %v1876
      %1878 = vmatmul.bf16.gmra.mxu0 %v1818
      %v1879 = vpop.f32.mrf.mxu0
      %v1880 = vadd.f32 0.0, %v1879
      %v1881 = vpop.f32.mrf.mxu0
      %v1882 = vadd.f32 0.0, %v1881
      %1883 = vmatmul.bf16.gmra.mxu0 %v1821
      %v1884 = vpop.f32.mrf.mxu0
      %v1885 = vadd.f32 0.0, %v1884
      %v1886 = vpop.f32.mrf.mxu0
      %v1887 = vadd.f32 0.0, %v1886
      %1888 = vmatmul.bf16.gmra.mxu0 %v1824
      %v1889 = vpop.f32.mrf.mxu0
      %v1890 = vadd.f32 0.0, %v1889
      %v1891 = vpop.f32.mrf.mxu0
      %v1892 = vadd.f32 0.0, %v1891
      %1893 = vmatmul.bf16.gmra.mxu0 %v1827
      %v1894 = vpop.f32.mrf.mxu0
      %v1895 = vadd.f32 0.0, %v1894
      %v1896 = vpop.f32.mrf.mxu0
      %v1897 = vadd.f32 0.0, %v1896
      %1898 = vmatmul.bf16.gmra.mxu0 %v1830
      %v1899 = vpop.f32.mrf.mxu0
      %v1900 = vadd.f32 0.0, %v1899
      %v1901 = vpop.f32.mrf.mxu0
      %v1902 = vadd.f32 0.0, %v1901
      %1903 = vmatmul.bf16.gmra.mxu0 %v1833
      %v1904 = vpop.f32.mrf.mxu0
      %v1905 = vadd.f32 0.0, %v1904
      %v1906 = vpop.f32.mrf.mxu0
      %v1907 = vadd.f32 0.0, %v1906
      %1908 = vmatmul.bf16.gmra.mxu0 %v1836
      %v1909 = vpop.f32.mrf.mxu0
      %v1910 = vadd.f32 0.0, %v1909
      %v1911 = vpop.f32.mrf.mxu0
      %v1912 = vadd.f32 0.0, %v1911
      %1913 = vmatmul.bf16.gmra.mxu0 %v1839
      %v1914 = vpop.f32.mrf.mxu0
      %v1915 = vadd.f32 0.0, %v1914
      %v1916 = vpop.f32.mrf.mxu0
      %v1917 = vadd.f32 0.0, %v1916
      %1918 = vmatmul.bf16.gmra.mxu0 %v1842
      %v1919 = vpop.f32.mrf.mxu0
      %v1920 = vadd.f32 0.0, %v1919
      %v1921 = vpop.f32.mrf.mxu0
      %v1922 = vadd.f32 0.0, %v1921
      %1923 = vmatmul.bf16.gmra.mxu0 %v1845
      %v1924 = vpop.f32.mrf.mxu0
      %v1925 = vadd.f32 0.0, %v1924
      %v1926 = vpop.f32.mrf.mxu0
      %v1927 = vadd.f32 0.0, %v1926
      %1928 = vmatmul.bf16.gmra.mxu0 %v1848
      %v1929 = vpop.f32.mrf.mxu0
      %v1930 = vadd.f32 0.0, %v1929
      %v1931 = vpop.f32.mrf.mxu0
      %v1932 = vadd.f32 0.0, %v1931
      %1933 = vmatmul.bf16.gmra.mxu0 %v1851
      %v1934 = vpop.f32.mrf.mxu0
      %v1935 = vadd.f32 0.0, %v1934
      %v1936 = vpop.f32.mrf.mxu0
      %v1937 = vadd.f32 0.0, %v1936
      %1938 = vmatmul.bf16.gmra.mxu0 %v1854
      %v1939 = vpop.f32.mrf.mxu0
      %v1940 = vadd.f32 0.0, %v1939
      %v1941 = vpop.f32.mrf.mxu0
      %v1942 = vadd.f32 0.0, %v1941
      %1943 = vmatmul.bf16.gmra.mxu0 %v1857
      %v1944 = vpop.f32.mrf.mxu0
      %v1945 = vadd.f32 0.0, %v1944
      %v1946 = vpop.f32.mrf.mxu0
      %v1947 = vadd.f32 0.0, %v1946
      %1948 = vmatmul.bf16.gmra.mxu0 %v1860
      %v1949 = vpop.f32.mrf.mxu0
      %v1950 = vadd.f32 0.0, %v1949
      %v1951 = vpop.f32.mrf.mxu0
      %v1952 = vadd.f32 0.0, %v1951
      %1953 = vdwg.mxu0
      %v1954 = vadd.f32 %v1614, %v1875
      %v1955 = vadd.f32 %v1616, %v1877
      %v1956 = vadd.f32 %v1619, %v1880
      %v1957 = vadd.f32 %v1621, %v1882
      %v1958 = vadd.f32 %v1624, %v1885
      %v1959 = vadd.f32 %v1626, %v1887
      %v1960 = vadd.f32 %v1629, %v1890
      %v1961 = vadd.f32 %v1631, %v1892
      %v1962 = vadd.f32 %v1634, %v1895
      %v1963 = vadd.f32 %v1636, %v1897
      %v1964 = vadd.f32 %v1639, %v1900
      %v1965 = vadd.f32 %v1641, %v1902
      %v1966 = vadd.f32 %v1644, %v1905
      %v1967 = vadd.f32 %v1646, %v1907
      %v1968 = vadd.f32 %v1649, %v1910
      %v1969 = vadd.f32 %v1651, %v1912
      %v1970 = vadd.f32 %v1654, %v1915
      %v1971 = vadd.f32 %v1656, %v1917
      %v1972 = vadd.f32 %v1659, %v1920
      %v1973 = vadd.f32 %v1661, %v1922
      %v1974 = vadd.f32 %v1664, %v1925
      %v1975 = vadd.f32 %v1666, %v1927
      %v1976 = vadd.f32 %v1669, %v1930
      %v1977 = vadd.f32 %v1671, %v1932
      %v1978 = vadd.f32 %v1674, %v1935
      %v1979 = vadd.f32 %v1676, %v1937
      %v1980 = vadd.f32 %v1679, %v1940
      %v1981 = vadd.f32 %v1681, %v1942
      %v1982 = vadd.f32 %v1684, %v1945
      %v1983 = vadd.f32 %v1686, %v1947
      %v1984 = vadd.f32 %v1689, %v1950
      %v1985 = vadd.f32 %v1691, %v1952
      %vm1986 = vcmp.gt.f32.partialorder %v1954, 0.0
      %vm1987 = vcmp.gt.f32.partialorder %v1955, 0.0
      %vm1988 = vcmp.gt.f32.partialorder %v1956, 0.0
      %vm1989 = vcmp.gt.f32.partialorder %v1957, 0.0
      %vm1990 = vcmp.gt.f32.partialorder %v1958, 0.0
      %vm1991 = vcmp.gt.f32.partialorder %v1959, 0.0
      %vm1992 = vcmp.gt.f32.partialorder %v1960, 0.0
      %vm1993 = vcmp.gt.f32.partialorder %v1961, 0.0
      %vm1994 = vcmp.gt.f32.partialorder %v1962, 0.0
      %vm1995 = vcmp.gt.f32.partialorder %v1963, 0.0
      %vm1996 = vcmp.gt.f32.partialorder %v1964, 0.0
      %vm1997 = vcmp.gt.f32.partialorder %v1965, 0.0
      %vm1998 = vcmp.gt.f32.partialorder %v1966, 0.0
      %vm1999 = vcmp.gt.f32.partialorder %v1967, 0.0
      %vm2000 = vcmp.gt.f32.partialorder %v1968, 0.0
      %vm2001 = vcmp.gt.f32.partialorder %v1969, 0.0
      %vm2002 = vcmp.gt.f32.partialorder %v1970, 0.0
      %vm2003 = vcmp.gt.f32.partialorder %v1971, 0.0
      %vm2004 = vcmp.gt.f32.partialorder %v1972, 0.0
      %vm2005 = vcmp.gt.f32.partialorder %v1973, 0.0
      %vm2006 = vcmp.gt.f32.partialorder %v1974, 0.0
      %vm2007 = vcmp.gt.f32.partialorder %v1975, 0.0
      %vm2008 = vcmp.gt.f32.partialorder %v1976, 0.0
      %vm2009 = vcmp.gt.f32.partialorder %v1977, 0.0
      %vm2010 = vcmp.gt.f32.partialorder %v1978, 0.0
      %vm2011 = vcmp.gt.f32.partialorder %v1979, 0.0
      %vm2012 = vcmp.gt.f32.partialorder %v1980, 0.0
      %vm2013 = vcmp.gt.f32.partialorder %v1981, 0.0
      %vm2014 = vcmp.gt.f32.partialorder %v1982, 0.0
      %vm2015 = vcmp.gt.f32.partialorder %v1983, 0.0
      %vm2016 = vcmp.gt.f32.partialorder %v1984, 0.0
      %vm2017 = vcmp.gt.f32.partialorder %v1985, 0.0
      %v2018 = vmul.f32 %v1954, 1.442695
      %v2019 = vpow.pop %v2018
      %v2020 = vmul.f32 %v1955, 1.442695
      %v2021 = vpow.pop %v2020
      %v2022 = vmul.f32 %v1956, 1.442695
      %v2023 = vpow.pop %v2022
      %v2024 = vmul.f32 %v1957, 1.442695
      %v2025 = vpow.pop %v2024
      %v2026 = vmul.f32 %v1958, 1.442695
      %v2027 = vpow.pop %v2026
      %v2028 = vmul.f32 %v1959, 1.442695
      %v2029 = vpow.pop %v2028
      %v2030 = vmul.f32 %v1960, 1.442695
      %v2031 = vpow.pop %v2030
      %v2032 = vmul.f32 %v1961, 1.442695
      %v2033 = vpow.pop %v2032
      %v2034 = vmul.f32 %v1962, 1.442695
      %v2035 = vpow.pop %v2034
      %v2036 = vmul.f32 %v1963, 1.442695
      %v2037 = vpow.pop %v2036
      %v2038 = vmul.f32 %v1964, 1.442695
      %v2039 = vpow.pop %v2038
      %v2040 = vmul.f32 %v1965, 1.442695
      %v2041 = vpow.pop %v2040
      %v2042 = vmul.f32 %v1966, 1.442695
      %v2043 = vpow.pop %v2042
      %v2044 = vmul.f32 %v1967, 1.442695
      %v2045 = vpow.pop %v2044
      %v2046 = vmul.f32 %v1968, 1.442695
      %v2047 = vpow.pop %v2046
      %v2048 = vmul.f32 %v1969, 1.442695
      %v2049 = vpow.pop %v2048
      %v2050 = vmul.f32 %v1970, 1.442695
      %v2051 = vpow.pop %v2050
      %v2052 = vmul.f32 %v1971, 1.442695
      %v2053 = vpow.pop %v2052
      %v2054 = vmul.f32 %v1972, 1.442695
      %v2055 = vpow.pop %v2054
      %v2056 = vmul.f32 %v1973, 1.442695
      %v2057 = vpow.pop %v2056
      %v2058 = vmul.f32 %v1974, 1.442695
      %v2059 = vpow.pop %v2058
      %v2060 = vmul.f32 %v1975, 1.442695
      %v2061 = vpow.pop %v2060
      %v2062 = vmul.f32 %v1976, 1.442695
      %v2063 = vpow.pop %v2062
      %v2064 = vmul.f32 %v1977, 1.442695
      %v2065 = vpow.pop %v2064
      %v2066 = vmul.f32 %v1978, 1.442695
      %v2067 = vpow.pop %v2066
      %v2068 = vmul.f32 %v1979, 1.442695
      %v2069 = vpow.pop %v2068
      %v2070 = vmul.f32 %v1980, 1.442695
      %v2071 = vpow.pop %v2070
      %v2072 = vmul.f32 %v1981, 1.442695
      %v2073 = vpow.pop %v2072
      %v2074 = vmul.f32 %v1982, 1.442695
      %v2075 = vpow.pop %v2074
      %v2076 = vmul.f32 %v1983, 1.442695
      %v2077 = vpow.pop %v2076
      %v2078 = vmul.f32 %v1984, 1.442695
      %v2079 = vpow.pop %v2078
      %v2080 = vmul.f32 %v1985, 1.442695
      %v2081 = vpow.pop %v2080
      %v2082 = vsub.f32 %v2019, 1.0
      %v2083 = vsub.f32 %v2021, 1.0
      %v2084 = vsub.f32 %v2023, 1.0
      %v2085 = vsub.f32 %v2025, 1.0
      %v2086 = vsub.f32 %v2027, 1.0
      %v2087 = vsub.f32 %v2029, 1.0
      %v2088 = vsub.f32 %v2031, 1.0
      %v2089 = vsub.f32 %v2033, 1.0
      %v2090 = vsub.f32 %v2035, 1.0
      %v2091 = vsub.f32 %v2037, 1.0
      %v2092 = vsub.f32 %v2039, 1.0
      %v2093 = vsub.f32 %v2041, 1.0
      %v2094 = vsub.f32 %v2043, 1.0
      %v2095 = vsub.f32 %v2045, 1.0
      %v2096 = vsub.f32 %v2047, 1.0
      %v2097 = vsub.f32 %v2049, 1.0
      %v2098 = vsub.f32 %v2051, 1.0
      %v2099 = vsub.f32 %v2053, 1.0
      %v2100 = vsub.f32 %v2055, 1.0
      %v2101 = vsub.f32 %v2057, 1.0
      %v2102 = vsub.f32 %v2059, 1.0
      %v2103 = vsub.f32 %v2061, 1.0
      %v2104 = vsub.f32 %v2063, 1.0
      %v2105 = vsub.f32 %v2065, 1.0
      %v2106 = vsub.f32 %v2067, 1.0
      %v2107 = vsub.f32 %v2069, 1.0
      %v2108 = vsub.f32 %v2071, 1.0
      %v2109 = vsub.f32 %v2073, 1.0
      %v2110 = vsub.f32 %v2075, 1.0
      %v2111 = vsub.f32 %v2077, 1.0
      %v2112 = vsub.f32 %v2079, 1.0
      %v2113 = vsub.f32 %v2081, 1.0
      %v2114 = vsel %vm1986, %v1954, %v2082
      %v2115 = vsel %vm1987, %v1955, %v2083
      %v2116 = vsel %vm1988, %v1956, %v2084
      %v2117 = vsel %vm1989, %v1957, %v2085
      %v2118 = vsel %vm1990, %v1958, %v2086
      %v2119 = vsel %vm1991, %v1959, %v2087
      %v2120 = vsel %vm1992, %v1960, %v2088
      %v2121 = vsel %vm1993, %v1961, %v2089
      %v2122 = vsel %vm1994, %v1962, %v2090
      %v2123 = vsel %vm1995, %v1963, %v2091
      %v2124 = vsel %vm1996, %v1964, %v2092
      %v2125 = vsel %vm1997, %v1965, %v2093
      %v2126 = vsel %vm1998, %v1966, %v2094
      %v2127 = vsel %vm1999, %v1967, %v2095
      %v2128 = vsel %vm2000, %v1968, %v2096
      %v2129 = vsel %vm2001, %v1969, %v2097
      %v2130 = vsel %vm2002, %v1970, %v2098
      %v2131 = vsel %vm2003, %v1971, %v2099
      %v2132 = vsel %vm2004, %v1972, %v2100
      %v2133 = vsel %vm2005, %v1973, %v2101
      %v2134 = vsel %vm2006, %v1974, %v2102
      %v2135 = vsel %vm2007, %v1975, %v2103
      %v2136 = vsel %vm2008, %v1976, %v2104
      %v2137 = vsel %vm2009, %v1977, %v2105
      %v2138 = vsel %vm2010, %v1978, %v2106
      %v2139 = vsel %vm2011, %v1979, %v2107
      %v2140 = vsel %vm2012, %v1980, %v2108
      %v2141 = vsel %vm2013, %v1981, %v2109
      %v2142 = vsel %vm2014, %v1982, %v2110
      %v2143 = vsel %vm2015, %v1983, %v2111
      %v2144 = vsel %vm2016, %v1984, %v2112
      %v2145 = vsel %vm2017, %v1985, %v2113
      %v2146 = vpack.c.bf16 %v2115, %v2114
      %v2147 = vpack.c.bf16 %v2117, %v2116
      %v2148 = vpack.c.bf16 %v2119, %v2118
      %v2149 = vpack.c.bf16 %v2121, %v2120
      %v2150 = vpack.c.bf16 %v2123, %v2122
      %v2151 = vpack.c.bf16 %v2125, %v2124
      %v2152 = vpack.c.bf16 %v2127, %v2126
      %v2153 = vpack.c.bf16 %v2129, %v2128
      %v2154 = vpack.c.bf16 %v2131, %v2130
      %v2155 = vpack.c.bf16 %v2133, %v2132
      %v2156 = vpack.c.bf16 %v2135, %v2134
      %v2157 = vpack.c.bf16 %v2137, %v2136
      %v2158 = vpack.c.bf16 %v2139, %v2138
      %v2159 = vpack.c.bf16 %v2141, %v2140
      %v2160 = vpack.c.bf16 %v2143, %v2142
      %v2161 = vpack.c.bf16 %v2145, %v2144
      %v2162 = vld [vmem:[%s2] sm:$0xf]
      %vm2163 = vcmask 64512
      %v2165 = vsel %vm2163, %v2146, 0
      %v2168 = vsel %vm2163, %v2147, 0
      %v2171 = vsel %vm2163, %v2148, 0
      %v2174 = vsel %vm2163, %v2149, 0
      %v2177 = vsel %vm2163, %v2150, 0
      %v2180 = vsel %vm2163, %v2151, 0
      %v2183 = vsel %vm2163, %v2152, 0
      %v2186 = vsel %vm2163, %v2153, 0
      %v2189 = vsel %vm2163, %v2154, 0
      %v2192 = vsel %vm2163, %v2155, 0
      %v2195 = vsel %vm2163, %v2156, 0
      %v2198 = vsel %vm2163, %v2157, 0
      %v2201 = vsel %vm2163, %v2158, 0
      %v2204 = vsel %vm2163, %v2159, 0
      %v2207 = vsel %vm2163, %v2160, 0
      %v2210 = vsel %vm2163, %v2161, 0
      %vm2212 = vcmask 1043456
      %v2214 = vsel %vm2212, %v2162, 0
      %2216 = vmatpush.bf16.msra.mxu0 0
      %2217 = vmatpush.bf16.msra.mxu0 0
      %2218 = vmatpush.bf16.msra.mxu0 0
      %2219 = vmatpush.bf16.msra.mxu0 0
      %2220 = vmatpush.bf16.msra.mxu0 0
      %2221 = vmatpush.bf16.msra.mxu0 0
      %2222 = vmatpush.bf16.msra.mxu0 0
      %2223 = vmatpush.bf16.msra.mxu0 %v2214
      %2224 = vmatmul.bf16.gmra.mxu0 %v2165
      %v2225 = vpop.f32.mrf.mxu0
      %v2226 = vadd.f32 0.0, %v2225
      %v2227 = vpop.f32.mrf.mxu0
      %v2228 = vadd.f32 0.0, %v2227
      %2229 = vmatmul.bf16.gmra.mxu0 %v2168
      %v2230 = vpop.f32.mrf.mxu0
      %v2231 = vadd.f32 0.0, %v2230
      %v2232 = vpop.f32.mrf.mxu0
      %v2233 = vadd.f32 0.0, %v2232
      %2234 = vmatmul.bf16.gmra.mxu0 %v2171
      %v2235 = vpop.f32.mrf.mxu0
      %v2236 = vadd.f32 0.0, %v2235
      %v2237 = vpop.f32.mrf.mxu0
      %v2238 = vadd.f32 0.0, %v2237
      %2239 = vmatmul.bf16.gmra.mxu0 %v2174
      %v2240 = vpop.f32.mrf.mxu0
      %v2241 = vadd.f32 0.0, %v2240
      %v2242 = vpop.f32.mrf.mxu0
      %v2243 = vadd.f32 0.0, %v2242
      %2244 = vmatmul.bf16.gmra.mxu0 %v2177
      %v2245 = vpop.f32.mrf.mxu0
      %v2246 = vadd.f32 0.0, %v2245
      %v2247 = vpop.f32.mrf.mxu0
      %v2248 = vadd.f32 0.0, %v2247
      %2249 = vmatmul.bf16.gmra.mxu0 %v2180
      %v2250 = vpop.f32.mrf.mxu0
      %v2251 = vadd.f32 0.0, %v2250
      %v2252 = vpop.f32.mrf.mxu0
      %v2253 = vadd.f32 0.0, %v2252
      %2254 = vmatmul.bf16.gmra.mxu0 %v2183
      %v2255 = vpop.f32.mrf.mxu0
      %v2256 = vadd.f32 0.0, %v2255
      %v2257 = vpop.f32.mrf.mxu0
      %v2258 = vadd.f32 0.0, %v2257
      %2259 = vmatmul.bf16.gmra.mxu0 %v2186
      %v2260 = vpop.f32.mrf.mxu0
      %v2261 = vadd.f32 0.0, %v2260
      %v2262 = vpop.f32.mrf.mxu0
      %v2263 = vadd.f32 0.0, %v2262
      %2264 = vmatmul.bf16.gmra.mxu0 %v2189
      %v2265 = vpop.f32.mrf.mxu0
      %v2266 = vadd.f32 0.0, %v2265
      %v2267 = vpop.f32.mrf.mxu0
      %v2268 = vadd.f32 0.0, %v2267
      %2269 = vmatmul.bf16.gmra.mxu0 %v2192
      %v2270 = vpop.f32.mrf.mxu0
      %v2271 = vadd.f32 0.0, %v2270
      %v2272 = vpop.f32.mrf.mxu0
      %v2273 = vadd.f32 0.0, %v2272
      %2274 = vmatmul.bf16.gmra.mxu0 %v2195
      %v2275 = vpop.f32.mrf.mxu0
      %v2276 = vadd.f32 0.0, %v2275
      %v2277 = vpop.f32.mrf.mxu0
      %v2278 = vadd.f32 0.0, %v2277
      %2279 = vmatmul.bf16.gmra.mxu0 %v2198
      %v2280 = vpop.f32.mrf.mxu0
      %v2281 = vadd.f32 0.0, %v2280
      %v2282 = vpop.f32.mrf.mxu0
      %v2283 = vadd.f32 0.0, %v2282
      %2284 = vmatmul.bf16.gmra.mxu0 %v2201
      %v2285 = vpop.f32.mrf.mxu0
      %v2286 = vadd.f32 0.0, %v2285
      %v2287 = vpop.f32.mrf.mxu0
      %v2288 = vadd.f32 0.0, %v2287
      %2289 = vmatmul.bf16.gmra.mxu0 %v2204
      %v2290 = vpop.f32.mrf.mxu0
      %v2291 = vadd.f32 0.0, %v2290
      %v2292 = vpop.f32.mrf.mxu0
      %v2293 = vadd.f32 0.0, %v2292
      %2294 = vmatmul.bf16.gmra.mxu0 %v2207
      %v2295 = vpop.f32.mrf.mxu0
      %v2296 = vadd.f32 0.0, %v2295
      %v2297 = vpop.f32.mrf.mxu0
      %v2298 = vadd.f32 0.0, %v2297
      %2299 = vmatmul.bf16.gmra.mxu0 %v2210
      %v2300 = vpop.f32.mrf.mxu0
      %v2301 = vadd.f32 0.0, %v2300
      %v2302 = vpop.f32.mrf.mxu0
      %v2303 = vadd.f32 0.0, %v2302
      %2304 = vdwg.mxu0
      %vm2305 = vcmp.gt.f32.partialorder %v2226, 0.0
      %vm2306 = vcmp.gt.f32.partialorder %v2228, 0.0
      %vm2307 = vcmp.gt.f32.partialorder %v2231, 0.0
      %vm2308 = vcmp.gt.f32.partialorder %v2233, 0.0
      %vm2309 = vcmp.gt.f32.partialorder %v2236, 0.0
      %vm2310 = vcmp.gt.f32.partialorder %v2238, 0.0
      %vm2311 = vcmp.gt.f32.partialorder %v2241, 0.0
      %vm2312 = vcmp.gt.f32.partialorder %v2243, 0.0
      %vm2313 = vcmp.gt.f32.partialorder %v2246, 0.0
      %vm2314 = vcmp.gt.f32.partialorder %v2248, 0.0
      %vm2315 = vcmp.gt.f32.partialorder %v2251, 0.0
      %vm2316 = vcmp.gt.f32.partialorder %v2253, 0.0
      %vm2317 = vcmp.gt.f32.partialorder %v2256, 0.0
      %vm2318 = vcmp.gt.f32.partialorder %v2258, 0.0
      %vm2319 = vcmp.gt.f32.partialorder %v2261, 0.0
      %vm2320 = vcmp.gt.f32.partialorder %v2263, 0.0
      %vm2321 = vcmp.gt.f32.partialorder %v2266, 0.0
      %vm2322 = vcmp.gt.f32.partialorder %v2268, 0.0
      %vm2323 = vcmp.gt.f32.partialorder %v2271, 0.0
      %vm2324 = vcmp.gt.f32.partialorder %v2273, 0.0
      %vm2325 = vcmp.gt.f32.partialorder %v2276, 0.0
      %vm2326 = vcmp.gt.f32.partialorder %v2278, 0.0
      %vm2327 = vcmp.gt.f32.partialorder %v2281, 0.0
      %vm2328 = vcmp.gt.f32.partialorder %v2283, 0.0
      %vm2329 = vcmp.gt.f32.partialorder %v2286, 0.0
      %vm2330 = vcmp.gt.f32.partialorder %v2288, 0.0
      %vm2331 = vcmp.gt.f32.partialorder %v2291, 0.0
      %vm2332 = vcmp.gt.f32.partialorder %v2293, 0.0
      %vm2333 = vcmp.gt.f32.partialorder %v2296, 0.0
      %vm2334 = vcmp.gt.f32.partialorder %v2298, 0.0
      %vm2335 = vcmp.gt.f32.partialorder %v2301, 0.0
      %vm2336 = vcmp.gt.f32.partialorder %v2303, 0.0
      %v2337 = vmul.f32 %v2226, 1.442695
      %v2338 = vpow.pop %v2337
      %v2339 = vmul.f32 %v2228, 1.442695
      %v2340 = vpow.pop %v2339
      %v2341 = vmul.f32 %v2231, 1.442695
      %v2342 = vpow.pop %v2341
      %v2343 = vmul.f32 %v2233, 1.442695
      %v2344 = vpow.pop %v2343
      %v2345 = vmul.f32 %v2236, 1.442695
      %v2346 = vpow.pop %v2345
      %v2347 = vmul.f32 %v2238, 1.442695
      %v2348 = vpow.pop %v2347
      %v2349 = vmul.f32 %v2241, 1.442695
      %v2350 = vpow.pop %v2349
      %v2351 = vmul.f32 %v2243, 1.442695
      %v2352 = vpow.pop %v2351
      %v2353 = vmul.f32 %v2246, 1.442695
      %v2354 = vpow.pop %v2353
      %v2355 = vmul.f32 %v2248, 1.442695
      %v2356 = vpow.pop %v2355
      %v2357 = vmul.f32 %v2251, 1.442695
      %v2358 = vpow.pop %v2357
      %v2359 = vmul.f32 %v2253, 1.442695
      %v2360 = vpow.pop %v2359
      %v2361 = vmul.f32 %v2256, 1.442695
      %v2362 = vpow.pop %v2361
      %v2363 = vmul.f32 %v2258, 1.442695
      %v2364 = vpow.pop %v2363
      %v2365 = vmul.f32 %v2261, 1.442695
      %v2366 = vpow.pop %v2365
      %v2367 = vmul.f32 %v2263, 1.442695
      %v2368 = vpow.pop %v2367
      %v2369 = vmul.f32 %v2266, 1.442695
      %v2370 = vpow.pop %v2369
      %v2371 = vmul.f32 %v2268, 1.442695
      %v2372 = vpow.pop %v2371
      %v2373 = vmul.f32 %v2271, 1.442695
      %v2374 = vpow.pop %v2373
      %v2375 = vmul.f32 %v2273, 1.442695
      %v2376 = vpow.pop %v2375
      %v2377 = vmul.f32 %v2276, 1.442695
      %v2378 = vpow.pop %v2377
      %v2379 = vmul.f32 %v2278, 1.442695
      %v2380 = vpow.pop %v2379
      %v2381 = vmul.f32 %v2281, 1.442695
      %v2382 = vpow.pop %v2381
      %v2383 = vmul.f32 %v2283, 1.442695
      %v2384 = vpow.pop %v2383
      %v2385 = vmul.f32 %v2286, 1.442695
      %v2386 = vpow.pop %v2385
      %v2387 = vmul.f32 %v2288, 1.442695
      %v2388 = vpow.pop %v2387
      %v2389 = vmul.f32 %v2291, 1.442695
      %v2390 = vpow.pop %v2389
      %v2391 = vmul.f32 %v2293, 1.442695
      %v2392 = vpow.pop %v2391
      %v2393 = vmul.f32 %v2296, 1.442695
      %v2394 = vpow.pop %v2393
      %v2395 = vmul.f32 %v2298, 1.442695
      %v2396 = vpow.pop %v2395
      %v2397 = vmul.f32 %v2301, 1.442695
      %v2398 = vpow.pop %v2397
      %v2399 = vmul.f32 %v2303, 1.442695
      %v2400 = vpow.pop %v2399
      %v2401 = vsub.f32 %v2338, 1.0
      %v2402 = vsub.f32 %v2340, 1.0
      %v2403 = vsub.f32 %v2342, 1.0
      %v2404 = vsub.f32 %v2344, 1.0
      %v2405 = vsub.f32 %v2346, 1.0
      %v2406 = vsub.f32 %v2348, 1.0
      %v2407 = vsub.f32 %v2350, 1.0
      %v2408 = vsub.f32 %v2352, 1.0
      %v2409 = vsub.f32 %v2354, 1.0
      %v2410 = vsub.f32 %v2356, 1.0
      %v2411 = vsub.f32 %v2358, 1.0
      %v2412 = vsub.f32 %v2360, 1.0
      %v2413 = vsub.f32 %v2362, 1.0
      %v2414 = vsub.f32 %v2364, 1.0
      %v2415 = vsub.f32 %v2366, 1.0
      %v2416 = vsub.f32 %v2368, 1.0
      %v2417 = vsub.f32 %v2370, 1.0
      %v2418 = vsub.f32 %v2372, 1.0
      %v2419 = vsub.f32 %v2374, 1.0
      %v2420 = vsub.f32 %v2376, 1.0
      %v2421 = vsub.f32 %v2378, 1.0
      %v2422 = vsub.f32 %v2380, 1.0
      %v2423 = vsub.f32 %v2382, 1.0
      %v2424 = vsub.f32 %v2384, 1.0
      %v2425 = vsub.f32 %v2386, 1.0
      %v2426 = vsub.f32 %v2388, 1.0
      %v2427 = vsub.f32 %v2390, 1.0
      %v2428 = vsub.f32 %v2392, 1.0
      %v2429 = vsub.f32 %v2394, 1.0
      %v2430 = vsub.f32 %v2396, 1.0
      %v2431 = vsub.f32 %v2398, 1.0
      %v2432 = vsub.f32 %v2400, 1.0
      %v2433 = vsel %vm2305, %v2226, %v2401
      %v2434 = vsel %vm2306, %v2228, %v2402
      %v2435 = vsel %vm2307, %v2231, %v2403
      %v2436 = vsel %vm2308, %v2233, %v2404
      %v2437 = vsel %vm2309, %v2236, %v2405
      %v2438 = vsel %vm2310, %v2238, %v2406
      %v2439 = vsel %vm2311, %v2241, %v2407
      %v2440 = vsel %vm2312, %v2243, %v2408
      %v2441 = vsel %vm2313, %v2246, %v2409
      %v2442 = vsel %vm2314, %v2248, %v2410
      %v2443 = vsel %vm2315, %v2251, %v2411
      %v2444 = vsel %vm2316, %v2253, %v2412
      %v2445 = vsel %vm2317, %v2256, %v2413
      %v2446 = vsel %vm2318, %v2258, %v2414
      %v2447 = vsel %vm2319, %v2261, %v2415
      %v2448 = vsel %vm2320, %v2263, %v2416
      %v2449 = vsel %vm2321, %v2266, %v2417
      %v2450 = vsel %vm2322, %v2268, %v2418
      %v2451 = vsel %vm2323, %v2271, %v2419
      %v2452 = vsel %vm2324, %v2273, %v2420
      %v2453 = vsel %vm2325, %v2276, %v2421
      %v2454 = vsel %vm2326, %v2278, %v2422
      %v2455 = vsel %vm2327, %v2281, %v2423
      %v2456 = vsel %vm2328, %v2283, %v2424
      %v2457 = vsel %vm2329, %v2286, %v2425
      %v2458 = vsel %vm2330, %v2288, %v2426
      %v2459 = vsel %vm2331, %v2291, %v2427
      %v2460 = vsel %vm2332, %v2293, %v2428
      %v2461 = vsel %vm2333, %v2296, %v2429
      %v2462 = vsel %vm2334, %v2298, %v2430
      %v2463 = vsel %vm2335, %v2301, %v2431
      %v2464 = vsel %vm2336, %v2303, %v2432
      %v2465 = vpack.c.bf16 %v2433, %v2433
      %v2466 = vpack.c.bf16 %v2434, %v2434
      %v2467 = vpack.c.bf16 %v2435, %v2435
      %v2468 = vpack.c.bf16 %v2436, %v2436
      %v2469 = vpack.c.bf16 %v2437, %v2437
      %v2470 = vpack.c.bf16 %v2438, %v2438
      %v2471 = vpack.c.bf16 %v2439, %v2439
      %v2472 = vpack.c.bf16 %v2440, %v2440
      %v2473 = vpack.c.bf16 %v2441, %v2441
      %v2474 = vpack.c.bf16 %v2442, %v2442
      %v2475 = vpack.c.bf16 %v2443, %v2443
      %v2476 = vpack.c.bf16 %v2444, %v2444
      %v2477 = vpack.c.bf16 %v2445, %v2445
      %v2478 = vpack.c.bf16 %v2446, %v2446
      %v2479 = vpack.c.bf16 %v2447, %v2447
      %v2480 = vpack.c.bf16 %v2448, %v2448
      %v2481 = vpack.c.bf16 %v2449, %v2449
      %v2482 = vpack.c.bf16 %v2450, %v2450
      %v2483 = vpack.c.bf16 %v2451, %v2451
      %v2484 = vpack.c.bf16 %v2452, %v2452
      %v2485 = vpack.c.bf16 %v2453, %v2453
      %v2486 = vpack.c.bf16 %v2454, %v2454
      %v2487 = vpack.c.bf16 %v2455, %v2455
      %v2488 = vpack.c.bf16 %v2456, %v2456
      %v2489 = vpack.c.bf16 %v2457, %v2457
      %v2490 = vpack.c.bf16 %v2458, %v2458
      %v2491 = vpack.c.bf16 %v2459, %v2459
      %v2492 = vpack.c.bf16 %v2460, %v2460
      %v2493 = vpack.c.bf16 %v2461, %v2461
      %v2494 = vpack.c.bf16 %v2462, %v2462
      %v2495 = vpack.c.bf16 %v2463, %v2463
      %v2496 = vpack.c.bf16 %v2464, %v2464
      %vm2497 = vcmask 257024
      %2498 = vst.msk [vmem:[%s170] sm:$0xf] %vm2497, %v2465
      %2499 = vst.msk [vmem:[%s170 + $0x4] sm:$0xf] %vm2497, %v2466
      %2500 = vst.msk [vmem:[%s170 + $0x8] sm:$0xf] %vm2497, %v2467
      %2501 = vst.msk [vmem:[%s170 + $0xc] sm:$0xf] %vm2497, %v2468
      %2502 = vst.msk [vmem:[%s170 + $0x10] sm:$0xf] %vm2497, %v2469
      %2503 = vst.msk [vmem:[%s170 + $0x14] sm:$0xf] %vm2497, %v2470
      %2504 = vst.msk [vmem:[%s170 + $0x18] sm:$0xf] %vm2497, %v2471
      %2505 = vst.msk [vmem:[%s170 + $0x1c] sm:$0xf] %vm2497, %v2472
      %2506 = vst.msk [vmem:[%s170 + $0x20] sm:$0xf] %vm2497, %v2473
      %2507 = vst.msk [vmem:[%s170 + $0x24] sm:$0xf] %vm2497, %v2474
      %2508 = vst.msk [vmem:[%s170 + $0x28] sm:$0xf] %vm2497, %v2475
      %2509 = vst.msk [vmem:[%s170 + $0x2c] sm:$0xf] %vm2497, %v2476
      %2510 = vst.msk [vmem:[%s170 + $0x30] sm:$0xf] %vm2497, %v2477
      %2511 = vst.msk [vmem:[%s170 + $0x34] sm:$0xf] %vm2497, %v2478
      %2512 = vst.msk [vmem:[%s170 + $0x38] sm:$0xf] %vm2497, %v2479
      %2513 = vst.msk [vmem:[%s170 + $0x3c] sm:$0xf] %vm2497, %v2480
      %2514 = vst.msk [vmem:[%s170 + $0x40] sm:$0xf] %vm2497, %v2481
      %2515 = vst.msk [vmem:[%s170 + $0x44] sm:$0xf] %vm2497, %v2482
      %2516 = vst.msk [vmem:[%s170 + $0x48] sm:$0xf] %vm2497, %v2483
      %2517 = vst.msk [vmem:[%s170 + $0x4c] sm:$0xf] %vm2497, %v2484
      %2518 = vst.msk [vmem:[%s170 + $0x50] sm:$0xf] %vm2497, %v2485
      %2519 = vst.msk [vmem:[%s170 + $0x54] sm:$0xf] %vm2497, %v2486
      %2520 = vst.msk [vmem:[%s170 + $0x58] sm:$0xf] %vm2497, %v2487
      %2521 = vst.msk [vmem:[%s170 + $0x5c] sm:$0xf] %vm2497, %v2488
      %2522 = vst.msk [vmem:[%s170 + $0x60] sm:$0xf] %vm2497, %v2489
      %2523 = vst.msk [vmem:[%s170 + $0x64] sm:$0xf] %vm2497, %v2490
      %2524 = vst.msk [vmem:[%s170 + $0x68] sm:$0xf] %vm2497, %v2491
      %2525 = vst.msk [vmem:[%s170 + $0x6c] sm:$0xf] %vm2497, %v2492
      %2526 = vst.msk [vmem:[%s170 + $0x70] sm:$0xf] %vm2497, %v2493
      %2527 = vst.msk [vmem:[%s170 + $0x74] sm:$0xf] %vm2497, %v2494
      %2528 = vst.msk [vmem:[%s170 + $0x78] sm:$0xf] %vm2497, %v2495
      %2529 = vst.msk [vmem:[%s170 + $0x7c] sm:$0xf] %vm2497, %v2496
      %p2530 = scmp.lt.s32.totalorder %s14, 1
      %s2531 = scalar_select %p2530, %s14, 1
      %s2532 = smul.addr %s2531, 32
      %s2533 = smul.addr %s2532, 4
      %s2534 = scalar_lea.vmem %s3, %s2533
      // Predicated region
      $region33: #{bridge_forward.1} parent=31 // pred_check
        %p2535 = pneg %p100
      $region34: #{bridge_forward.1} parent=31 // pred_check_branch
        %2537 = sbr.rel (%p2535) target = $region36
      $region35: #{bridge_forward.1} parent=31 // pred_region
        _
      $region36: #{bridge_forward.1} parent=31 // pred_fallthru
        _
    $region32: #{bridge_forward.1} parent=5 // pred_fallthru
      _
    %p2538 = scmp.le.s32.totalorder 2, %s9
    // Predicated region
    $region37: #{bridge_forward.1} parent=5 // pred_check
      %p2539 = pneg %p2538
    $region38: #{bridge_forward.1} parent=5 // pred_check_branch
      %2541 = sbr.rel (%p2539) target = $region40
    $region39: #{bridge_forward.1} parent=5 // pred_region
      %s2542 = ssub.s32 %s9, 2
      // Predicated region
      $region41: #{bridge_forward.1} parent=39 // pred_check
        %p2543 = pneg %p106
      $region42: #{bridge_forward.1} parent=39 // pred_check_branch
        %2545 = sbr.rel (%p2543) target = $region44
      $region43: #{bridge_forward.1} parent=39 // pred_region
        %p2546 = scmp.lt.s32.totalorder %s15, 1
        %s2547 = scalar_select %p2546, %s15, 1
        %s2548 = smul.addr %s2547, 32
        %s2549 = smul.addr %s2548, 4
        %s2550 = scalar_lea.vmem %s3, %s2549
      $region44: #{bridge_forward.1} parent=39 // pred_fallthru
        _
    $region40: #{bridge_forward.1} parent=5 // pred_fallthru
      _
  $region6: #{bridge_forward.1} parent=0 // loop_footer
    %s13 = sadd.s32 1, %s9
  $region7: #{bridge_forward.1} parent=0 // loop_footer_branch
    %8 = sbr.rel target = $region3
  $region8: #{bridge_forward.1} parent=0 // loop_exit
    _

</llo_original>
